<compile_context>
chip_gen: v5e
topology: v5e:2x2
jax: 0.10.0
libtpu: 0.0.40
codegen_flags: <defaults>
</compile_context>

<pallas_src>
import jax
import jax.numpy as jnp
import numpy as np
from jax.experimental import pallas as pl
from jax.experimental.pallas import tpu as pltpu


# ----------------------------------------------------------------------------
# Parameters (eval-mode BN folded to per-channel scale / bias)
# ----------------------------------------------------------------------------
def _fold_bn(gamma, beta, mean, var, eps=1e-5):
    scale = gamma / jnp.sqrt(var + eps)
    bias = beta - mean * scale
    return scale, bias


def init_cfp_params(key, in_channels, out_channels, dilation_rates=(1, 3, 5, 9)):
    nb = len(dilation_rates)
    assert out_channels % nb == 0, "out_channels must be divisible by #branches"
    cb = out_channels // nb
    params = {"dilation_rates": tuple(int(d) for d in dilation_rates),
              "branches": [], "skip": None}
    keys = jax.random.split(key, 2 * nb + 4)
    ki = 0

    def bn_params(c, k):
        k1, k2, k3, k4 = jax.random.split(k, 4)
        gamma = 1.0 + 0.1 * jax.random.normal(k1, (c,), jnp.float32)
        beta = 0.1 * jax.random.normal(k2, (c,), jnp.float32)
        mean = 0.1 * jax.random.normal(k3, (c,), jnp.float32)
        var = 1.0 + 0.2 * jax.random.uniform(k4, (c,), jnp.float32)
        return _fold_bn(gamma, beta, mean, var)

    for _ in dilation_rates:
        w3 = 0.1 * jax.random.normal(keys[ki], (3, 3, in_channels, cb),
                                     jnp.float32)
        ki += 1
        scale, bias = bn_params(cb, keys[ki]); ki += 1
        params["branches"].append({"w3": w3, "scale": scale, "bias": bias})

    wf = 0.1 * jax.random.normal(keys[ki], (out_channels, out_channels),
                                 jnp.float32); ki += 1
    sf, bf = bn_params(out_channels, keys[ki]); ki += 1
    params["fusion"] = {"w": wf, "scale": sf, "bias": bf}

    if in_channels != out_channels:
        ws = 0.1 * jax.random.normal(keys[ki], (in_channels, out_channels),
                                     jnp.float32); ki += 1
        ss, bs = bn_params(out_channels, keys[ki]); ki += 1
        params["skip"] = {"w": ws, "scale": ss, "bias": bs}
    # else: nn.Identity skip -> plain residual add handled at trace time.
    return params


# ----------------------------------------------------------------------------
# Host-side packing: block-diagonal conv weight (+bias column, +skip rows)
# ----------------------------------------------------------------------------
def _pack_params(params, compute_dtype):
    branches = params["branches"]
    nb = len(branches)
    cin, cb = branches[0]["w3"].shape[2], branches[0]["w3"].shape[3]
    cout = nb * cb
    has_skip = params["skip"] is not None

    k_branch = nb * 9 * cin                      # rows of branch im2col
    k_tot = k_branch + 1 + (cin if has_skip else 0)   # +1 = constant-ones row
    m_tot = cout + (cout if has_skip else 0)

    wbig = jnp.zeros((m_tot, k_tot), jnp.float32)
    for b, bp in enumerate(branches):
        # fold BN scale into the 3x3 weights; reorder to (out_ch, tap*cin)
        w = (bp["w3"] * bp["scale"]).reshape(9, cin, cb)
        w = jnp.transpose(w, (2, 0, 1)).reshape(cb, 9 * cin)
        wbig = wbig.at[b * cb:(b + 1) * cb,
                       b * 9 * cin:(b + 1) * 9 * cin].set(w)
        # folded BN bias goes into the constant-ones column
        wbig = wbig.at[b * cb:(b + 1) * cb, k_branch].set(bp["bias"])
    if has_skip:
        sp = params["skip"]
        ws = (sp["w"] * sp["scale"]).T           # (cout, cin)
        wbig = wbig.at[cout:, k_branch + 1:].set(ws)
        wbig = wbig.at[cout:, k_branch].set(sp["bias"])

    fp = params["fusion"]
    wf = (fp["w"] * fp["scale"]).T               # (cout_out, cout_in)
    bf = fp["bias"].reshape(cout, 1)

    return dict(wbig=wbig.astype(compute_dtype), wf=wf.astype(compute_dtype),
                bf=bf.astype(jnp.float32), cout=cout, k_branch=k_branch,
                has_skip=has_skip)


def _make_masks(dilations, H, W, dtype):
    """0/1 boundary-validity mask per (branch, tap), flattened over H*W."""
    yy, xx = np.meshgrid(np.arange(H), np.arange(W), indexing="ij")
    yy, xx = yy.reshape(-1), xx.reshape(-1)
    rows = []
    for d in dilations:
        for t in range(9):
            ky, kx = divmod(t, 3)
            oy, ox = (ky - 1) * d, (kx - 1) * d
            valid = ((yy + oy >= 0) & (yy + oy < H) &
                     (xx + ox >= 0) & (xx + ox < W))
            rows.append(valid.astype(np.float32))
    return jnp.asarray(np.stack(rows), dtype=dtype)


# ----------------------------------------------------------------------------
# Fused CFP kernel
# ----------------------------------------------------------------------------
def _make_cfp_kernel(H, W, cin, cout, dilations, k_branch, has_skip,
                     nb_imgs, compute_dtype):
    HW = H * W
    L = nb_imgs * HW

    def kernel(x_ref, m_ref, wbig_ref, wf_ref, bf_ref, o_ref, col_ref, xx_ref):
        # -------- build the combined im2col matrix (k_tot, L) in VMEM -------
        # constant-ones row: folds the branch-BN and skip-BN biases into the
        # single big matmul.
        col_ref[k_branch:k_branch + 1, :] = jnp.ones((1, L), dtype=compute_dtype)

        for n in range(nb_imgs):
            lo = n * HW
            x_in = x_ref[n]                           # (cin, HW), input dtype
            xf = x_in.astype(compute_dtype)
            # duplicate x along lanes so every tap is ONE lane-offset window
            xx_ref[:, :HW] = xf
            xx_ref[:, HW:] = xf
            for b, d in enumerate(dilations):
                for t in range(9):
                    ky, kx = divmod(t, 3)
                    shift = ((ky - 1) * W + (kx - 1)) * d   # flat lane shift
                    idx = b * 9 + t
                    if shift == 0:
                        tap = xf                      # center tap: no shift/mask
                    else:
                        k = shift % HW
                        # lane-offset window + boundary mask.  Wrapped lanes
                        # are always boundary-invalid, so the mask fixes them.
                        tap = xx_ref[:, k:k + HW] * m_ref[idx:idx + 1, :]
                    col_ref[idx * cin:(idx + 1) * cin, lo:lo + HW] = tap
            if has_skip:
                # extra rows feeding the 1x1 skip conv inside the same matmul
                col_ref[k_branch + 1:k_branch + 1 + cin, lo:lo + HW] = xf

        # -------- ONE matmul: 4 dilated 3x3 convs (+BN bias) and skip 1x1 ---
        big = jnp.dot(wbig_ref[...], col_ref[...],
                      preferred_element_type=jnp.float32)      # (m_tot, L) f32

        branch_cat = jnp.maximum(big[:cout, :], 0.0)           # ReLU per branch

        # -------- 1x1 fusion conv (+BN) + ReLU -------------------------------
        fused = jnp.dot(wf_ref[...], branch_cat.astype(compute_dtype),
                        preferred_element_type=jnp.float32)
        fused = jnp.maximum(fused + bf_ref[...], 0.0)          # (cout, L) f32

        # -------- residual add + lane-dense NCHW-native store ---------------
        for n in range(nb_imgs):
            lo = n * HW
            if has_skip:
                res = fused[:, lo:lo + HW] + big[cout:, lo:lo + HW]
            else:
                # identity skip: add the ORIGINAL (f32) activations, not the
                # compute-dtype-rounded copy.
                res = fused[:, lo:lo + HW] + x_ref[n].astype(jnp.float32)
            o_ref[n] = res.astype(o_ref.dtype)

    return kernel


def cfp_block_forward(params, x_nchw, compute_dtype=jnp.bfloat16,
                      out_dtype=None, images_per_block=1):
    """x_nchw: (N, Cin, H, W) -> (N, Cout, H, W); matches CFPBlock.forward."""
    dilations = params["dilation_rates"]
    N, cin, H, W = x_nchw.shape
    HW = H * W
    nb_imgs = int(images_per_block)
    assert N % nb_imgs == 0, "batch must be divisible by images_per_block"

    packed = _pack_params(params, compute_dtype)
    cout, k_branch = packed["cout"], packed["k_branch"]
    has_skip = packed["has_skip"]
    if not has_skip:
        assert cin == cout, "identity skip requires Cin == Cout"
    m_tot, k_tot = packed["wbig"].shape
    out_dtype = x_nchw.dtype if out_dtype is None else out_dtype

    masks = _make_masks(dilations, H, W, compute_dtype)        # (4*9, HW)

    # NCHW-native: flatten spatial onto lanes.  No transpose, no padding pass.
    x_flat = x_nchw.reshape(N, cin, HW)

    kernel = _make_cfp_kernel(H, W, cin, cout, dilations, k_branch, has_skip,
                              nb_imgs, compute_dtype)

    out = pl.pallas_call(
        kernel,
        out_shape=jax.ShapeDtypeStruct((N, cout, HW), out_dtype),
        grid_spec=pltpu.PrefetchScalarGridSpec(
            num_scalar_prefetch=0,
            grid=(N // nb_imgs,),
            in_specs=[
                pl.BlockSpec((nb_imgs, cin, HW), lambda i: (i, 0, 0)),
                pl.BlockSpec(masks.shape, lambda i: (0, 0)),
                pl.BlockSpec((m_tot, k_tot), lambda i: (0, 0)),
                pl.BlockSpec((cout, cout), lambda i: (0, 0)),
                pl.BlockSpec((cout, 1), lambda i: (0, 0)),
            ],
            out_specs=pl.BlockSpec((nb_imgs, cout, HW), lambda i: (i, 0, 0)),
            scratch_shapes=[
                pltpu.VMEM((k_tot, nb_imgs * HW), compute_dtype),  # im2col
                pltpu.VMEM((cin, 2 * HW), compute_dtype),          # x doubled
            ],
        ),
        compiler_params=pltpu.CompilerParams(
            dimension_semantics=("parallel",),
            vmem_limit_bytes=32 * 1024 * 1024),
    )(x_flat, masks, packed["wbig"], packed["wf"], packed["bf"])

    return out.reshape(N, cout, H, W)


# ----------------------------------------------------------------------------
# Pure-JAX reference (un-folded BN, ground truth)
# ----------------------------------------------------------------------------
def cfp_block_reference(params, x_nchw):
    x = jnp.transpose(x_nchw, (0, 2, 3, 1)).astype(jnp.float32)   # NHWC
    outs = []
    for d, bp in zip(params["dilation_rates"], params["branches"]):
        y = jax.lax.conv_general_dilated(
            x, bp["w3"], window_strides=(1, 1),
            padding=[(d, d), (d, d)], rhs_dilation=(d, d),
            dimension_numbers=("NHWC", "HWIO", "NHWC"))
        y = jnp.maximum(y * bp["scale"] + bp["bias"], 0.0)
        outs.append(y)
    cat = jnp.concatenate(outs, axis=-1)
    fp = params["fusion"]
    fused = jnp.einsum("nhwc,cd->nhwd", cat, fp["w"])
    fused = jnp.maximum(fused * fp["scale"] + fp["bias"], 0.0)
    if params["skip"] is not None:
        sp = params["skip"]
        skip = jnp.einsum("nhwc,cd->nhwd", x, sp["w"]) * sp["scale"] + sp["bias"]
    else:
        skip = x
    return jnp.transpose(fused + skip, (0, 3, 1, 2))


# ----------------------------------------------------------------------------
if __name__ == "__main__":
    key = jax.random.PRNGKey(0)
    k_param, k_param2, k_x, k_x2 = jax.random.split(key, 4)

    N, Cin, H, W = 2, 4, 16, 16
    Cout = 8
    x = jax.random.normal(k_x, (N, Cin, H, W), jnp.float32)

    # --- Case 1: projection skip (Cin != Cout), f32 compute ------------------
    params = init_cfp_params(k_param, Cin, Cout, dilation_rates=(1, 3, 5, 9))
    ref = jax.block_until_ready(cfp_block_reference(params, x))
    out = jax.block_until_ready(
        cfp_block_forward(params, x, compute_dtype=jnp.float32))
    assert out.shape == (N, Cout, H, W)
    np.testing.assert_allclose(np.asarray(out), np.asarray(ref),
                               rtol=1e-4, atol=1e-4)

    # --- Case 2: default bf16 compute (MXU-native), f32 residual/skip --------
    out_bf16 = jax.block_until_ready(cfp_block_forward(params, x))
    np.testing.assert_allclose(np.asarray(out_bf16), np.asarray(ref),
                               rtol=1e-1, atol=1e-1)

    # --- Case 3: identity skip (Cin == Cout) ---------------------------------
    params_id = init_cfp_params(k_param2, Cout, Cout, dilation_rates=(1, 3, 5, 9))
    x2 = jax.random.normal(k_x2, (N, Cout, H, W), jnp.float32)
    ref2 = jax.block_until_ready(cfp_block_reference(params_id, x2))
    out2 = jax.block_until_ready(
        cfp_block_forward(params_id, x2, compute_dtype=jnp.float32))
    np.testing.assert_allclose(np.asarray(out2), np.asarray(ref2),
                               rtol=1e-4, atol=1e-4)

    # --- Case 4: several images per grid step (lanes = Nb*H*W) ---------------
    out3 = jax.block_until_ready(
        cfp_block_forward(params, x, compute_dtype=jnp.float32,
                          images_per_block=2))
    np.testing.assert_allclose(np.asarray(out3), np.asarray(ref),
                               rtol=1e-4, atol=1e-4)

    print("KERNEL_OK")
</pallas_src>

<mosaic_0001>
module attributes {stable_mosaic.version = 11 : i64} {
  func.func @kernel(%arg0: i32, %arg1: memref<1x4x256xf32, #tpu.memory_space<vmem>>, %arg2: memref<36x256xf32, #tpu.memory_space<vmem>>, %arg3: memref<16x149xf32, #tpu.memory_space<vmem>>, %arg4: memref<8x8xf32, #tpu.memory_space<vmem>>, %arg5: memref<8x1xf32, #tpu.memory_space<vmem>>, %arg6: memref<1x8x256xf32, #tpu.memory_space<vmem>>, %arg7: memref<149x256xf32, #tpu.memory_space<vmem>>, %arg8: memref<4x512xf32, #tpu.memory_space<vmem>>) attributes {dimension_semantics = [#tpu.dimension_semantics<parallel>], iteration_bounds = array<i64: 2>, scalar_prefetch = 0 : i64, scratch_operands = 2 : i64, tpu.core_type = #tpu.core_type<tc>, window_params = [{transform_indices = @transform_0, window_bounds = array<i64: 1, 4, 256>}, {pipeline_mode = #tpu.pipeline_mode<synchronous>, transform_indices = @transform_1, window_bounds = array<i64: 36, 256>}, {pipeline_mode = #tpu.pipeline_mode<synchronous>, transform_indices = @transform_2, window_bounds = array<i64: 16, 149>}, {pipeline_mode = #tpu.pipeline_mode<synchronous>, transform_indices = @transform_3, window_bounds = array<i64: 8, 8>}, {pipeline_mode = #tpu.pipeline_mode<synchronous>, transform_indices = @transform_4, window_bounds = array<i64: 8, 1>}, {transform_indices = @transform_5, window_bounds = array<i64: 1, 8, 256>}]} {
    %cst = arith.constant 1.000000e+00 : f32
    %0 = vector.broadcast %cst : f32 to vector<1x256xf32>
    %c144 = arith.constant 144 : index
    %c0 = arith.constant 0 : index
    %1 = vector.load %arg7[%c144, %c0] : memref<149x256xf32, #tpu.memory_space<vmem>>, vector<1x256xf32>
    tpu.vector_store %arg7[%c144, %c0], %0 {strides = array<i32>} : memref<149x256xf32, #tpu.memory_space<vmem>>, vector<1x256xf32>,
    %c0_0 = arith.constant 0 : index
    %c0_1 = arith.constant 0 : index
    %c0_2 = arith.constant 0 : index
    %2 = vector.load %arg1[%c0_0, %c0_1, %c0_2] : memref<1x4x256xf32, #tpu.memory_space<vmem>>, vector<1x4x256xf32>
    %3 = vector.shape_cast %2 : vector<1x4x256xf32> to vector<4x256xf32>
    %c0_3 = arith.constant 0 : index
    %c0_4 = arith.constant 0 : index
    %4 = vector.load %arg8[%c0_3, %c0_4] : memref<4x512xf32, #tpu.memory_space<vmem>>, vector<4x256xf32>
    tpu.vector_store %arg8[%c0_3, %c0_4], %3 {strides = array<i32>} : memref<4x512xf32, #tpu.memory_space<vmem>>, vector<4x256xf32>,
    %c0_5 = arith.constant 0 : index
    %c256 = arith.constant 256 : index
    %5 = vector.load %arg8[%c0_5, %c256] : memref<4x512xf32, #tpu.memory_space<vmem>>, vector<4x256xf32>
    tpu.vector_store %arg8[%c0_5, %c256], %3 {strides = array<i32>} : memref<4x512xf32, #tpu.memory_space<vmem>>, vector<4x256xf32>,
    %c0_6 = arith.constant 0 : index
    %c239 = arith.constant 239 : index
    %6 = vector.load %arg8[%c0_6, %c239] : memref<4x512xf32, #tpu.memory_space<vmem>>, vector<4x256xf32>
    %c0_7 = arith.constant 0 : index
    %c0_8 = arith.constant 0 : index
    %7 = vector.load %arg2[%c0_7, %c0_8] : memref<36x256xf32, #tpu.memory_space<vmem>>, vector<1x256xf32>
    %8 = vector.broadcast %7 : vector<1x256xf32> to vector<4x256xf32>
    %9 = arith.mulf %6, %8 : vector<4x256xf32>
    %c0_9 = arith.constant 0 : index
    %c0_10 = arith.constant 0 : index
    %10 = vector.load %arg7[%c0_9, %c0_10] : memref<149x256xf32, #tpu.memory_space<vmem>>, vector<4x256xf32>
    tpu.vector_store %arg7[%c0_9, %c0_10], %9 {strides = array<i32>} : memref<149x256xf32, #tpu.memory_space<vmem>>, vector<4x256xf32>,
    %c0_11 = arith.constant 0 : index
    %c240 = arith.constant 240 : index
    %11 = vector.load %arg8[%c0_11, %c240] : memref<4x512xf32, #tpu.memory_space<vmem>>, vector<4x256xf32>
    %c1 = arith.constant 1 : index
    %c0_12 = arith.constant 0 : index
    %12 = vector.load %arg2[%c1, %c0_12] : memref<36x256xf32, #tpu.memory_space<vmem>>, vector<1x256xf32>
    %13 = vector.broadcast %12 : vector<1x256xf32> to vector<4x256xf32>
    %14 = arith.mulf %11, %13 : vector<4x256xf32>
    %c4 = arith.constant 4 : index
    %c0_13 = arith.constant 0 : index
    %15 = vector.load %arg7[%c4, %c0_13] : memref<149x256xf32, #tpu.memory_space<vmem>>, vector<4x256xf32>
    tpu.vector_store %arg7[%c4, %c0_13], %14 {strides = array<i32>} : memref<149x256xf32, #tpu.memory_space<vmem>>, vector<4x256xf32>,
    %c0_14 = arith.constant 0 : index
    %c241 = arith.constant 241 : index
    %16 = vector.load %arg8[%c0_14, %c241] : memref<4x512xf32, #tpu.memory_space<vmem>>, vector<4x256xf32>
    %c2 = arith.constant 2 : index
    %c0_15 = arith.constant 0 : index
    %17 = vector.load %arg2[%c2, %c0_15] : memref<36x256xf32, #tpu.memory_space<vmem>>, vector<1x256xf32>
    %18 = vector.broadcast %17 : vector<1x256xf32> to vector<4x256xf32>
    %19 = arith.mulf %16, %18 : vector<4x256xf32>
    %c8 = arith.constant 8 : index
    %c0_16 = arith.constant 0 : index
    %20 = vector.load %arg7[%c8, %c0_16] : memref<149x256xf32, #tpu.memory_space<vmem>>, vector<4x256xf32>
    tpu.vector_store %arg7[%c8, %c0_16], %19 {strides = array<i32>} : memref<149x256xf32, #tpu.memory_space<vmem>>, vector<4x256xf32>,
    %c0_17 = arith.constant 0 : index
    %c255 = arith.constant 255 : index
    %21 = vector.load %arg8[%c0_17, %c255] : memref<4x512xf32, #tpu.memory_space<vmem>>, vector<4x256xf32>
    %c3 = arith.constant 3 : index
    %c0_18 = arith.constant 0 : index
    %22 = vector.load %arg2[%c3, %c0_18] : memref<36x256xf32, #tpu.memory_space<vmem>>, vector<1x256xf32>
    %23 = vector.broadcast %22 : vector<1x256xf32> to vector<4x256xf32>
    %24 = arith.mulf %21, %23 : vector<4x256xf32>
    %c12 = arith.constant 12 : index
    %c0_19 = arith.constant 0 : index
    %25 = vector.load %arg7[%c12, %c0_19] : memref<149x256xf32, #tpu.memory_space<vmem>>, vector<4x256xf32>
    tpu.vector_store %arg7[%c12, %c0_19], %24 {strides = array<i32>} : memref<149x256xf32, #tpu.memory_space<vmem>>, vector<4x256xf32>,
    %c16 = arith.constant 16 : index
    %c0_20 = arith.constant 0 : index
    %26 = vector.load %arg7[%c16, %c0_20] : memref<149x256xf32, #tpu.memory_space<vmem>>, vector<4x256xf32>
    tpu.vector_store %arg7[%c16, %c0_20], %3 {strides = array<i32>} : memref<149x256xf32, #tpu.memory_space<vmem>>, vector<4x256xf32>,
    %c0_21 = arith.constant 0 : index
    %c1_22 = arith.constant 1 : index
    %27 = vector.load %arg8[%c0_21, %c1_22] : memref<4x512xf32, #tpu.memory_space<vmem>>, vector<4x256xf32>
    %c5 = arith.constant 5 : index
    %c0_23 = arith.constant 0 : index
    %28 = vector.load %arg2[%c5, %c0_23] : memref<36x256xf32, #tpu.memory_space<vmem>>, vector<1x256xf32>
    %29 = vector.broadcast %28 : vector<1x256xf32> to vector<4x256xf32>
    %30 = arith.mulf %27, %29 : vector<4x256xf32>
    %c20 = arith.constant 20 : index
    %c0_24 = arith.constant 0 : index
    %31 = vector.load %arg7[%c20, %c0_24] : memref<149x256xf32, #tpu.memory_space<vmem>>, vector<4x256xf32>
    tpu.vector_store %arg7[%c20, %c0_24], %30 {strides = array<i32>} : memref<149x256xf32, #tpu.memory_space<vmem>>, vector<4x256xf32>,
    %c0_25 = arith.constant 0 : index
    %c15 = arith.constant 15 : index
    %32 = vector.load %arg8[%c0_25, %c15] : memref<4x512xf32, #tpu.memory_space<vmem>>, vector<4x256xf32>
    %c6 = arith.constant 6 : index
    %c0_26 = arith.constant 0 : index
    %33 = vector.load %arg2[%c6, %c0_26] : memref<36x256xf32, #tpu.memory_space<vmem>>, vector<1x256xf32>
    %34 = vector.broadcast %33 : vector<1x256xf32> to vector<4x256xf32>
    %35 = arith.mulf %32, %34 : vector<4x256xf32>
    %c24 = arith.constant 24 : index
    %c0_27 = arith.constant 0 : index
    %36 = vector.load %arg7[%c24, %c0_27] : memref<149x256xf32, #tpu.memory_space<vmem>>, vector<4x256xf32>
    tpu.vector_store %arg7[%c24, %c0_27], %35 {strides = array<i32>} : memref<149x256xf32, #tpu.memory_space<vmem>>, vector<4x256xf32>,
    %c0_28 = arith.constant 0 : index
    %c16_29 = arith.constant 16 : index
    %37 = vector.load %arg8[%c0_28, %c16_29] : memref<4x512xf32, #tpu.memory_space<vmem>>, vector<4x256xf32>
    %c7 = arith.constant 7 : index
    %c0_30 = arith.constant 0 : index
    %38 = vector.load %arg2[%c7, %c0_30] : memref<36x256xf32, #tpu.memory_space<vmem>>, vector<1x256xf32>
    %39 = vector.broadcast %38 : vector<1x256xf32> to vector<4x256xf32>
    %40 = arith.mulf %37, %39 : vector<4x256xf32>
    %c28 = arith.constant 28 : index
    %c0_31 = arith.constant 0 : index
    %41 = vector.load %arg7[%c28, %c0_31] : memref<149x256xf32, #tpu.memory_space<vmem>>, vector<4x256xf32>
    tpu.vector_store %arg7[%c28, %c0_31], %40 {strides = array<i32>} : memref<149x256xf32, #tpu.memory_space<vmem>>, vector<4x256xf32>,
    %c0_32 = arith.constant 0 : index
    %c17 = arith.constant 17 : index
    %42 = vector.load %arg8[%c0_32, %c17] : memref<4x512xf32, #tpu.memory_space<vmem>>, vector<4x256xf32>
    %c8_33 = arith.constant 8 : index
    %c0_34 = arith.constant 0 : index
    %43 = vector.load %arg2[%c8_33, %c0_34] : memref<36x256xf32, #tpu.memory_space<vmem>>, vector<1x256xf32>
    %44 = vector.broadcast %43 : vector<1x256xf32> to vector<4x256xf32>
    %45 = arith.mulf %42, %44 : vector<4x256xf32>
    %c32 = arith.constant 32 : index
    %c0_35 = arith.constant 0 : index
    %46 = vector.load %arg7[%c32, %c0_35] : memref<149x256xf32, #tpu.memory_space<vmem>>, vector<4x256xf32>
    tpu.vector_store %arg7[%c32, %c0_35], %45 {strides = array<i32>} : memref<149x256xf32, #tpu.memory_space<vmem>>, vector<4x256xf32>,
    %c0_36 = arith.constant 0 : index
    %c205 = arith.constant 205 : index
    %47 = vector.load %arg8[%c0_36, %c205] : memref<4x512xf32, #tpu.memory_space<vmem>>, vector<4x256xf32>
    %c9 = arith.constant 9 : index
    %c0_37 = arith.constant 0 : index
    %48 = vector.load %arg2[%c9, %c0_37] : memref<36x256xf32, #tpu.memory_space<vmem>>, vector<1x256xf32>
    %49 = vector.broadcast %48 : vector<1x256xf32> to vector<4x256xf32>
    %50 = arith.mulf %47, %49 : vector<4x256xf32>
    %c36 = arith.constant 36 : index
    %c0_38 = arith.constant 0 : index
    %51 = vector.load %arg7[%c36, %c0_38] : memref<149x256xf32, #tpu.memory_space<vmem>>, vector<4x256xf32>
    tpu.vector_store %arg7[%c36, %c0_38], %50 {strides = array<i32>} : memref<149x256xf32, #tpu.memory_space<vmem>>, vector<4x256xf32>,
    %c0_39 = arith.constant 0 : index
    %c208 = arith.constant 208 : index
    %52 = vector.load %arg8[%c0_39, %c208] : memref<4x512xf32, #tpu.memory_space<vmem>>, vector<4x256xf32>
    %c10 = arith.constant 10 : index
    %c0_40 = arith.constant 0 : index
    %53 = vector.load %arg2[%c10, %c0_40] : memref<36x256xf32, #tpu.memory_space<vmem>>, vector<1x256xf32>
    %54 = vector.broadcast %53 : vector<1x256xf32> to vector<4x256xf32>
    %55 = arith.mulf %52, %54 : vector<4x256xf32>
    %c40 = arith.constant 40 : index
    %c0_41 = arith.constant 0 : index
    %56 = vector.load %arg7[%c40, %c0_41] : memref<149x256xf32, #tpu.memory_space<vmem>>, vector<4x256xf32>
    tpu.vector_store %arg7[%c40, %c0_41], %55 {strides = array<i32>} : memref<149x256xf32, #tpu.memory_space<vmem>>, vector<4x256xf32>,
    %c0_42 = arith.constant 0 : index
    %c211 = arith.constant 211 : index
    %57 = vector.load %arg8[%c0_42, %c211] : memref<4x512xf32, #tpu.memory_space<vmem>>, vector<4x256xf32>
    %c11 = arith.constant 11 : index
    %c0_43 = arith.constant 0 : index
    %58 = vector.load %arg2[%c11, %c0_43] : memref<36x256xf32, #tpu.memory_space<vmem>>, vector<1x256xf32>
    %59 = vector.broadcast %58 : vector<1x256xf32> to vector<4x256xf32>
    %60 = arith.mulf %57, %59 : vector<4x256xf32>
    %c44 = arith.constant 44 : index
    %c0_44 = arith.constant 0 : index
    %61 = vector.load %arg7[%c44, %c0_44] : memref<149x256xf32, #tpu.memory_space<vmem>>, vector<4x256xf32>
    tpu.vector_store %arg7[%c44, %c0_44], %60 {strides = array<i32>} : memref<149x256xf32, #tpu.memory_space<vmem>>, vector<4x256xf32>,
    %c0_45 = arith.constant 0 : index
    %c253 = arith.constant 253 : index
    %62 = vector.load %arg8[%c0_45, %c253] : memref<4x512xf32, #tpu.memory_space<vmem>>, vector<4x256xf32>
    %c12_46 = arith.constant 12 : index
    %c0_47 = arith.constant 0 : index
    %63 = vector.load %arg2[%c12_46, %c0_47] : memref<36x256xf32, #tpu.memory_space<vmem>>, vector<1x256xf32>
    %64 = vector.broadcast %63 : vector<1x256xf32> to vector<4x256xf32>
    %65 = arith.mulf %62, %64 : vector<4x256xf32>
    %c48 = arith.constant 48 : index
    %c0_48 = arith.constant 0 : index
    %66 = vector.load %arg7[%c48, %c0_48] : memref<149x256xf32, #tpu.memory_space<vmem>>, vector<4x256xf32>
    tpu.vector_store %arg7[%c48, %c0_48], %65 {strides = array<i32>} : memref<149x256xf32, #tpu.memory_space<vmem>>, vector<4x256xf32>,
    %c52 = arith.constant 52 : index
    %c0_49 = arith.constant 0 : index
    %67 = vector.load %arg7[%c52, %c0_49] : memref<149x256xf32, #tpu.memory_space<vmem>>, vector<4x256xf32>
    tpu.vector_store %arg7[%c52, %c0_49], %3 {strides = array<i32>} : memref<149x256xf32, #tpu.memory_space<vmem>>, vector<4x256xf32>,
    %c0_50 = arith.constant 0 : index
    %c3_51 = arith.constant 3 : index
    %68 = vector.load %arg8[%c0_50, %c3_51] : memref<4x512xf32, #tpu.memory_space<vmem>>, vector<4x256xf32>
    %c14 = arith.constant 14 : index
    %c0_52 = arith.constant 0 : index
    %69 = vector.load %arg2[%c14, %c0_52] : memref<36x256xf32, #tpu.memory_space<vmem>>, vector<1x256xf32>
    %70 = vector.broadcast %69 : vector<1x256xf32> to vector<4x256xf32>
    %71 = arith.mulf %68, %70 : vector<4x256xf32>
    %c56 = arith.constant 56 : index
    %c0_53 = arith.constant 0 : index
    %72 = vector.load %arg7[%c56, %c0_53] : memref<149x256xf32, #tpu.memory_space<vmem>>, vector<4x256xf32>
    tpu.vector_store %arg7[%c56, %c0_53], %71 {strides = array<i32>} : memref<149x256xf32, #tpu.memory_space<vmem>>, vector<4x256xf32>,
    %c0_54 = arith.constant 0 : index
    %c45 = arith.constant 45 : index
    %73 = vector.load %arg8[%c0_54, %c45] : memref<4x512xf32, #tpu.memory_space<vmem>>, vector<4x256xf32>
    %c15_55 = arith.constant 15 : index
    %c0_56 = arith.constant 0 : index
    %74 = vector.load %arg2[%c15_55, %c0_56] : memref<36x256xf32, #tpu.memory_space<vmem>>, vector<1x256xf32>
    %75 = vector.broadcast %74 : vector<1x256xf32> to vector<4x256xf32>
    %76 = arith.mulf %73, %75 : vector<4x256xf32>
    %c60 = arith.constant 60 : index
    %c0_57 = arith.constant 0 : index
    %77 = vector.load %arg7[%c60, %c0_57] : memref<149x256xf32, #tpu.memory_space<vmem>>, vector<4x256xf32>
    tpu.vector_store %arg7[%c60, %c0_57], %76 {strides = array<i32>} : memref<149x256xf32, #tpu.memory_space<vmem>>, vector<4x256xf32>,
    %c0_58 = arith.constant 0 : index
    %c48_59 = arith.constant 48 : index
    %78 = vector.load %arg8[%c0_58, %c48_59] : memref<4x512xf32, #tpu.memory_space<vmem>>, vector<4x256xf32>
    %c16_60 = arith.constant 16 : index
    %c0_61 = arith.constant 0 : index
    %79 = vector.load %arg2[%c16_60, %c0_61] : memref<36x256xf32, #tpu.memory_space<vmem>>, vector<1x256xf32>
    %80 = vector.broadcast %79 : vector<1x256xf32> to vector<4x256xf32>
    %81 = arith.mulf %78, %80 : vector<4x256xf32>
    %c64 = arith.constant 64 : index
    %c0_62 = arith.constant 0 : index
    %82 = vector.load %arg7[%c64, %c0_62] : memref<149x256xf32, #tpu.memory_space<vmem>>, vector<4x256xf32>
    tpu.vector_store %arg7[%c64, %c0_62], %81 {strides = array<i32>} : memref<149x256xf32, #tpu.memory_space<vmem>>, vector<4x256xf32>,
    %c0_63 = arith.constant 0 : index
    %c51 = arith.constant 51 : index
    %83 = vector.load %arg8[%c0_63, %c51] : memref<4x512xf32, #tpu.memory_space<vmem>>, vector<4x256xf32>
    %c17_64 = arith.constant 17 : index
    %c0_65 = arith.constant 0 : index
    %84 = vector.load %arg2[%c17_64, %c0_65] : memref<36x256xf32, #tpu.memory_space<vmem>>, vector<1x256xf32>
    %85 = vector.broadcast %84 : vector<1x256xf32> to vector<4x256xf32>
    %86 = arith.mulf %83, %85 : vector<4x256xf32>
    %c68 = arith.constant 68 : index
    %c0_66 = arith.constant 0 : index
    %87 = vector.load %arg7[%c68, %c0_66] : memref<149x256xf32, #tpu.memory_space<vmem>>, vector<4x256xf32>
    tpu.vector_store %arg7[%c68, %c0_66], %86 {strides = array<i32>} : memref<149x256xf32, #tpu.memory_space<vmem>>, vector<4x256xf32>,
    %c0_67 = arith.constant 0 : index
    %c171 = arith.constant 171 : index
    %88 = vector.load %arg8[%c0_67, %c171] : memref<4x512xf32, #tpu.memory_space<vmem>>, vector<4x256xf32>
    %c18 = arith.constant 18 : index
    %c0_68 = arith.constant 0 : index
    %89 = vector.load %arg2[%c18, %c0_68] : memref<36x256xf32, #tpu.memory_space<vmem>>, vector<1x256xf32>
    %90 = vector.broadcast %89 : vector<1x256xf32> to vector<4x256xf32>
    %91 = arith.mulf %88, %90 : vector<4x256xf32>
    %c72 = arith.constant 72 : index
    %c0_69 = arith.constant 0 : index
    %92 = vector.load %arg7[%c72, %c0_69] : memref<149x256xf32, #tpu.memory_space<vmem>>, vector<4x256xf32>
    tpu.vector_store %arg7[%c72, %c0_69], %91 {strides = array<i32>} : memref<149x256xf32, #tpu.memory_space<vmem>>, vector<4x256xf32>,
    %c0_70 = arith.constant 0 : index
    %c176 = arith.constant 176 : index
    %93 = vector.load %arg8[%c0_70, %c176] : memref<4x512xf32, #tpu.memory_space<vmem>>, vector<4x256xf32>
    %c19 = arith.constant 19 : index
    %c0_71 = arith.constant 0 : index
    %94 = vector.load %arg2[%c19, %c0_71] : memref<36x256xf32, #tpu.memory_space<vmem>>, vector<1x256xf32>
    %95 = vector.broadcast %94 : vector<1x256xf32> to vector<4x256xf32>
    %96 = arith.mulf %93, %95 : vector<4x256xf32>
    %c76 = arith.constant 76 : index
    %c0_72 = arith.constant 0 : index
    %97 = vector.load %arg7[%c76, %c0_72] : memref<149x256xf32, #tpu.memory_space<vmem>>, vector<4x256xf32>
    tpu.vector_store %arg7[%c76, %c0_72], %96 {strides = array<i32>} : memref<149x256xf32, #tpu.memory_space<vmem>>, vector<4x256xf32>,
    %c0_73 = arith.constant 0 : index
    %c181 = arith.constant 181 : index
    %98 = vector.load %arg8[%c0_73, %c181] : memref<4x512xf32, #tpu.memory_space<vmem>>, vector<4x256xf32>
    %c20_74 = arith.constant 20 : index
    %c0_75 = arith.constant 0 : index
    %99 = vector.load %arg2[%c20_74, %c0_75] : memref<36x256xf32, #tpu.memory_space<vmem>>, vector<1x256xf32>
    %100 = vector.broadcast %99 : vector<1x256xf32> to vector<4x256xf32>
    %101 = arith.mulf %98, %100 : vector<4x256xf32>
    %c80 = arith.constant 80 : index
    %c0_76 = arith.constant 0 : index
    %102 = vector.load %arg7[%c80, %c0_76] : memref<149x256xf32, #tpu.memory_space<vmem>>, vector<4x256xf32>
    tpu.vector_store %arg7[%c80, %c0_76], %101 {strides = array<i32>} : memref<149x256xf32, #tpu.memory_space<vmem>>, vector<4x256xf32>,
    %c0_77 = arith.constant 0 : index
    %c251 = arith.constant 251 : index
    %103 = vector.load %arg8[%c0_77, %c251] : memref<4x512xf32, #tpu.memory_space<vmem>>, vector<4x256xf32>
    %c21 = arith.constant 21 : index
    %c0_78 = arith.constant 0 : index
    %104 = vector.load %arg2[%c21, %c0_78] : memref<36x256xf32, #tpu.memory_space<vmem>>, vector<1x256xf32>
    %105 = vector.broadcast %104 : vector<1x256xf32> to vector<4x256xf32>
    %106 = arith.mulf %103, %105 : vector<4x256xf32>
    %c84 = arith.constant 84 : index
    %c0_79 = arith.constant 0 : index
    %107 = vector.load %arg7[%c84, %c0_79] : memref<149x256xf32, #tpu.memory_space<vmem>>, vector<4x256xf32>
    tpu.vector_store %arg7[%c84, %c0_79], %106 {strides = array<i32>} : memref<149x256xf32, #tpu.memory_space<vmem>>, vector<4x256xf32>,
    %c88 = arith.constant 88 : index
    %c0_80 = arith.constant 0 : index
    %108 = vector.load %arg7[%c88, %c0_80] : memref<149x256xf32, #tpu.memory_space<vmem>>, vector<4x256xf32>
    tpu.vector_store %arg7[%c88, %c0_80], %3 {strides = array<i32>} : memref<149x256xf32, #tpu.memory_space<vmem>>, vector<4x256xf32>,
    %c0_81 = arith.constant 0 : index
    %c5_82 = arith.constant 5 : index
    %109 = vector.load %arg8[%c0_81, %c5_82] : memref<4x512xf32, #tpu.memory_space<vmem>>, vector<4x256xf32>
    %c23 = arith.constant 23 : index
    %c0_83 = arith.constant 0 : index
    %110 = vector.load %arg2[%c23, %c0_83] : memref<36x256xf32, #tpu.memory_space<vmem>>, vector<1x256xf32>
    %111 = vector.broadcast %110 : vector<1x256xf32> to vector<4x256xf32>
    %112 = arith.mulf %109, %111 : vector<4x256xf32>
    %c92 = arith.constant 92 : index
    %c0_84 = arith.constant 0 : index
    %113 = vector.load %arg7[%c92, %c0_84] : memref<149x256xf32, #tpu.memory_space<vmem>>, vector<4x256xf32>
    tpu.vector_store %arg7[%c92, %c0_84], %112 {strides = array<i32>} : memref<149x256xf32, #tpu.memory_space<vmem>>, vector<4x256xf32>,
    %c0_85 = arith.constant 0 : index
    %c75 = arith.constant 75 : index
    %114 = vector.load %arg8[%c0_85, %c75] : memref<4x512xf32, #tpu.memory_space<vmem>>, vector<4x256xf32>
    %c24_86 = arith.constant 24 : index
    %c0_87 = arith.constant 0 : index
    %115 = vector.load %arg2[%c24_86, %c0_87] : memref<36x256xf32, #tpu.memory_space<vmem>>, vector<1x256xf32>
    %116 = vector.broadcast %115 : vector<1x256xf32> to vector<4x256xf32>
    %117 = arith.mulf %114, %116 : vector<4x256xf32>
    %c96 = arith.constant 96 : index
    %c0_88 = arith.constant 0 : index
    %118 = vector.load %arg7[%c96, %c0_88] : memref<149x256xf32, #tpu.memory_space<vmem>>, vector<4x256xf32>
    tpu.vector_store %arg7[%c96, %c0_88], %117 {strides = array<i32>} : memref<149x256xf32, #tpu.memory_space<vmem>>, vector<4x256xf32>,
    %c0_89 = arith.constant 0 : index
    %c80_90 = arith.constant 80 : index
    %119 = vector.load %arg8[%c0_89, %c80_90] : memref<4x512xf32, #tpu.memory_space<vmem>>, vector<4x256xf32>
    %c25 = arith.constant 25 : index
    %c0_91 = arith.constant 0 : index
    %120 = vector.load %arg2[%c25, %c0_91] : memref<36x256xf32, #tpu.memory_space<vmem>>, vector<1x256xf32>
    %121 = vector.broadcast %120 : vector<1x256xf32> to vector<4x256xf32>
    %122 = arith.mulf %119, %121 : vector<4x256xf32>
    %c100 = arith.constant 100 : index
    %c0_92 = arith.constant 0 : index
    %123 = vector.load %arg7[%c100, %c0_92] : memref<149x256xf32, #tpu.memory_space<vmem>>, vector<4x256xf32>
    tpu.vector_store %arg7[%c100, %c0_92], %122 {strides = array<i32>} : memref<149x256xf32, #tpu.memory_space<vmem>>, vector<4x256xf32>,
    %c0_93 = arith.constant 0 : index
    %c85 = arith.constant 85 : index
    %124 = vector.load %arg8[%c0_93, %c85] : memref<4x512xf32, #tpu.memory_space<vmem>>, vector<4x256xf32>
    %c26 = arith.constant 26 : index
    %c0_94 = arith.constant 0 : index
    %125 = vector.load %arg2[%c26, %c0_94] : memref<36x256xf32, #tpu.memory_space<vmem>>, vector<1x256xf32>
    %126 = vector.broadcast %125 : vector<1x256xf32> to vector<4x256xf32>
    %127 = arith.mulf %124, %126 : vector<4x256xf32>
    %c104 = arith.constant 104 : index
    %c0_95 = arith.constant 0 : index
    %128 = vector.load %arg7[%c104, %c0_95] : memref<149x256xf32, #tpu.memory_space<vmem>>, vector<4x256xf32>
    tpu.vector_store %arg7[%c104, %c0_95], %127 {strides = array<i32>} : memref<149x256xf32, #tpu.memory_space<vmem>>, vector<4x256xf32>,
    %c0_96 = arith.constant 0 : index
    %c103 = arith.constant 103 : index
    %129 = vector.load %arg8[%c0_96, %c103] : memref<4x512xf32, #tpu.memory_space<vmem>>, vector<4x256xf32>
    %c27 = arith.constant 27 : index
    %c0_97 = arith.constant 0 : index
    %130 = vector.load %arg2[%c27, %c0_97] : memref<36x256xf32, #tpu.memory_space<vmem>>, vector<1x256xf32>
    %131 = vector.broadcast %130 : vector<1x256xf32> to vector<4x256xf32>
    %132 = arith.mulf %129, %131 : vector<4x256xf32>
    %c108 = arith.constant 108 : index
    %c0_98 = arith.constant 0 : index
    %133 = vector.load %arg7[%c108, %c0_98] : memref<149x256xf32, #tpu.memory_space<vmem>>, vector<4x256xf32>
    tpu.vector_store %arg7[%c108, %c0_98], %132 {strides = array<i32>} : memref<149x256xf32, #tpu.memory_space<vmem>>, vector<4x256xf32>,
    %c0_99 = arith.constant 0 : index
    %c112 = arith.constant 112 : index
    %134 = vector.load %arg8[%c0_99, %c112] : memref<4x512xf32, #tpu.memory_space<vmem>>, vector<4x256xf32>
    %c28_100 = arith.constant 28 : index
    %c0_101 = arith.constant 0 : index
    %135 = vector.load %arg2[%c28_100, %c0_101] : memref<36x256xf32, #tpu.memory_space<vmem>>, vector<1x256xf32>
    %136 = vector.broadcast %135 : vector<1x256xf32> to vector<4x256xf32>
    %137 = arith.mulf %134, %136 : vector<4x256xf32>
    %c112_102 = arith.constant 112 : index
    %c0_103 = arith.constant 0 : index
    %138 = vector.load %arg7[%c112_102, %c0_103] : memref<149x256xf32, #tpu.memory_space<vmem>>, vector<4x256xf32>
    tpu.vector_store %arg7[%c112_102, %c0_103], %137 {strides = array<i32>} : memref<149x256xf32, #tpu.memory_space<vmem>>, vector<4x256xf32>,
    %c0_104 = arith.constant 0 : index
    %c121 = arith.constant 121 : index
    %139 = vector.load %arg8[%c0_104, %c121] : memref<4x512xf32, #tpu.memory_space<vmem>>, vector<4x256xf32>
    %c29 = arith.constant 29 : index
    %c0_105 = arith.constant 0 : index
    %140 = vector.load %arg2[%c29, %c0_105] : memref<36x256xf32, #tpu.memory_space<vmem>>, vector<1x256xf32>
    %141 = vector.broadcast %140 : vector<1x256xf32> to vector<4x256xf32>
    %142 = arith.mulf %139, %141 : vector<4x256xf32>
    %c116 = arith.constant 116 : index
    %c0_106 = arith.constant 0 : index
    %143 = vector.load %arg7[%c116, %c0_106] : memref<149x256xf32, #tpu.memory_space<vmem>>, vector<4x256xf32>
    tpu.vector_store %arg7[%c116, %c0_106], %142 {strides = array<i32>} : memref<149x256xf32, #tpu.memory_space<vmem>>, vector<4x256xf32>,
    %c0_107 = arith.constant 0 : index
    %c247 = arith.constant 247 : index
    %144 = vector.load %arg8[%c0_107, %c247] : memref<4x512xf32, #tpu.memory_space<vmem>>, vector<4x256xf32>
    %c30 = arith.constant 30 : index
    %c0_108 = arith.constant 0 : index
    %145 = vector.load %arg2[%c30, %c0_108] : memref<36x256xf32, #tpu.memory_space<vmem>>, vector<1x256xf32>
    %146 = vector.broadcast %145 : vector<1x256xf32> to vector<4x256xf32>
    %147 = arith.mulf %144, %146 : vector<4x256xf32>
    %c120 = arith.constant 120 : index
    %c0_109 = arith.constant 0 : index
    %148 = vector.load %arg7[%c120, %c0_109] : memref<149x256xf32, #tpu.memory_space<vmem>>, vector<4x256xf32>
    tpu.vector_store %arg7[%c120, %c0_109], %147 {strides = array<i32>} : memref<149x256xf32, #tpu.memory_space<vmem>>, vector<4x256xf32>,
    %c124 = arith.constant 124 : index
    %c0_110 = arith.constant 0 : index
    %149 = vector.load %arg7[%c124, %c0_110] : memref<149x256xf32, #tpu.memory_space<vmem>>, vector<4x256xf32>
    tpu.vector_store %arg7[%c124, %c0_110], %3 {strides = array<i32>} : memref<149x256xf32, #tpu.memory_space<vmem>>, vector<4x256xf32>,
    %c0_111 = arith.constant 0 : index
    %c9_112 = arith.constant 9 : index
    %150 = vector.load %arg8[%c0_111, %c9_112] : memref<4x512xf32, #tpu.memory_space<vmem>>, vector<4x256xf32>
    %c32_113 = arith.constant 32 : index
    %c0_114 = arith.constant 0 : index
    %151 = vector.load %arg2[%c32_113, %c0_114] : memref<36x256xf32, #tpu.memory_space<vmem>>, vector<1x256xf32>
    %152 = vector.broadcast %151 : vector<1x256xf32> to vector<4x256xf32>
    %153 = arith.mulf %150, %152 : vector<4x256xf32>
    %c128 = arith.constant 128 : index
    %c0_115 = arith.constant 0 : index
    %154 = vector.load %arg7[%c128, %c0_115] : memref<149x256xf32, #tpu.memory_space<vmem>>, vector<4x256xf32>
    tpu.vector_store %arg7[%c128, %c0_115], %153 {strides = array<i32>} : memref<149x256xf32, #tpu.memory_space<vmem>>, vector<4x256xf32>,
    %c0_116 = arith.constant 0 : index
    %c135 = arith.constant 135 : index
    %155 = vector.load %arg8[%c0_116, %c135] : memref<4x512xf32, #tpu.memory_space<vmem>>, vector<4x256xf32>
    %c33 = arith.constant 33 : index
    %c0_117 = arith.constant 0 : index
    %156 = vector.load %arg2[%c33, %c0_117] : memref<36x256xf32, #tpu.memory_space<vmem>>, vector<1x256xf32>
    %157 = vector.broadcast %156 : vector<1x256xf32> to vector<4x256xf32>
    %158 = arith.mulf %155, %157 : vector<4x256xf32>
    %c132 = arith.constant 132 : index
    %c0_118 = arith.constant 0 : index
    %159 = vector.load %arg7[%c132, %c0_118] : memref<149x256xf32, #tpu.memory_space<vmem>>, vector<4x256xf32>
    tpu.vector_store %arg7[%c132, %c0_118], %158 {strides = array<i32>} : memref<149x256xf32, #tpu.memory_space<vmem>>, vector<4x256xf32>,
    %c0_119 = arith.constant 0 : index
    %c144_120 = arith.constant 144 : index
    %160 = vector.load %arg8[%c0_119, %c144_120] : memref<4x512xf32, #tpu.memory_space<vmem>>, vector<4x256xf32>
    %c34 = arith.constant 34 : index
    %c0_121 = arith.constant 0 : index
    %161 = vector.load %arg2[%c34, %c0_121] : memref<36x256xf32, #tpu.memory_space<vmem>>, vector<1x256xf32>
    %162 = vector.broadcast %161 : vector<1x256xf32> to vector<4x256xf32>
    %163 = arith.mulf %160, %162 : vector<4x256xf32>
    %c136 = arith.constant 136 : index
    %c0_122 = arith.constant 0 : index
    %164 = vector.load %arg7[%c136, %c0_122] : memref<149x256xf32, #tpu.memory_space<vmem>>, vector<4x256xf32>
    tpu.vector_store %arg7[%c136, %c0_122], %163 {strides = array<i32>} : memref<149x256xf32, #tpu.memory_space<vmem>>, vector<4x256xf32>,
    %c0_123 = arith.constant 0 : index
    %c153 = arith.constant 153 : index
    %165 = vector.load %arg8[%c0_123, %c153] : memref<4x512xf32, #tpu.memory_space<vmem>>, vector<4x256xf32>
    %c35 = arith.constant 35 : index
    %c0_124 = arith.constant 0 : index
    %166 = vector.load %arg2[%c35, %c0_124] : memref<36x256xf32, #tpu.memory_space<vmem>>, vector<1x256xf32>
    %167 = vector.broadcast %166 : vector<1x256xf32> to vector<4x256xf32>
    %168 = arith.mulf %165, %167 : vector<4x256xf32>
    %c140 = arith.constant 140 : index
    %c0_125 = arith.constant 0 : index
    %169 = vector.load %arg7[%c140, %c0_125] : memref<149x256xf32, #tpu.memory_space<vmem>>, vector<4x256xf32>
    tpu.vector_store %arg7[%c140, %c0_125], %168 {strides = array<i32>} : memref<149x256xf32, #tpu.memory_space<vmem>>, vector<4x256xf32>,
    %c145 = arith.constant 145 : index
    %c0_126 = arith.constant 0 : index
    %170 = vector.load %arg7[%c145, %c0_126] : memref<149x256xf32, #tpu.memory_space<vmem>>, vector<4x256xf32>
    tpu.vector_store %arg7[%c145, %c0_126], %3 {strides = array<i32>} : memref<149x256xf32, #tpu.memory_space<vmem>>, vector<4x256xf32>,
    %c0_127 = arith.constant 0 : index
    %c0_128 = arith.constant 0 : index
    %171 = vector.load %arg3[%c0_127, %c0_128] : memref<16x149xf32, #tpu.memory_space<vmem>>, vector<16x149xf32>
    %c0_129 = arith.constant 0 : index
    %c0_130 = arith.constant 0 : index
    %172 = vector.load %arg7[%c0_129, %c0_130] : memref<149x256xf32, #tpu.memory_space<vmem>>, vector<149x256xf32>
    %cst_131 = arith.constant dense<0.000000e+00> : vector<16x256xf32>
    %173 = tpu.matmul %171, %172, %cst_131 {dimension_numbers = #tpu.dot_dimension_numbers<[1], [0], [0], [1], [0, 0, 1, 1], [], []>} : vector<16x149xf32>, vector<149x256xf32>, vector<16x256xf32> -> vector<16x256xf32>
    %174 = vector.extract_strided_slice %173 {offsets = [0, 0], sizes = [8, 256], strides = [1, 1]} : vector<16x256xf32> to vector<8x256xf32>
    %cst_132 = arith.constant 0.000000e+00 : f32
    %175 = vector.broadcast %cst_132 : f32 to vector<8x256xf32>
    %176 = arith.maximumf %174, %175 : vector<8x256xf32>
    %c0_133 = arith.constant 0 : index
    %c0_134 = arith.constant 0 : index
    %177 = vector.load %arg4[%c0_133, %c0_134] : memref<8x8xf32, #tpu.memory_space<vmem>>, vector<8x8xf32>
    %cst_135 = arith.constant dense<0.000000e+00> : vector<8x256xf32>
    %178 = tpu.matmul %177, %176, %cst_135 {dimension_numbers = #tpu.dot_dimension_numbers<[1], [0], [0], [1], [0, 0, 1, 1], [], []>} : vector<8x8xf32>, vector<8x256xf32>, vector<8x256xf32> -> vector<8x256xf32>
    %c0_136 = arith.constant 0 : index
    %c0_137 = arith.constant 0 : index
    %179 = vector.load %arg5[%c0_136, %c0_137] : memref<8x1xf32, #tpu.memory_space<vmem>>, vector<8x1xf32>
    %180 = vector.broadcast %179 : vector<8x1xf32> to vector<8x256xf32>
    %181 = arith.addf %178, %180 : vector<8x256xf32>
    %cst_138 = arith.constant 0.000000e+00 : f32
    %182 = vector.broadcast %cst_138 : f32 to vector<8x256xf32>
    %183 = arith.maximumf %181, %182 : vector<8x256xf32>
    %184 = vector.extract_strided_slice %173 {offsets = [8, 0], sizes = [8, 256], strides = [1, 1]} : vector<16x256xf32> to vector<8x256xf32>
    %185 = arith.addf %183, %184 : vector<8x256xf32>
    %c0_139 = arith.constant 0 : index
    %c0_140 = arith.constant 0 : index
    %c0_141 = arith.constant 0 : index
    %186 = vector.load %arg6[%c0_139, %c0_140, %c0_141] : memref<1x8x256xf32, #tpu.memory_space<vmem>>, vector<1x8x256xf32>
    %187 = vector.shape_cast %186 : vector<1x8x256xf32> to vector<8x256xf32>
    %188 = vector.shape_cast %185 : vector<8x256xf32> to vector<1x8x256xf32>
    tpu.vector_store %arg6[%c0_139, %c0_140, %c0_141], %188 {strides = array<i32>} : memref<1x8x256xf32, #tpu.memory_space<vmem>>, vector<1x8x256xf32>,
    return
  }
  func.func @transform_0(%arg0: i32) -> (i32, i32, i32) {
    %c0_i32 = arith.constant 0 : i32
    %c0_i32_0 = arith.constant 0 : i32
    %c0_i32_1 = arith.constant 0 : i32
    return %arg0, %c0_i32, %c0_i32_0 : i32, i32, i32
  }
  func.func @transform_1(%arg0: i32) -> (i32, i32) {
    %c0_i32 = arith.constant 0 : i32
    %c0_i32_0 = arith.constant 0 : i32
    %c0_i32_1 = arith.constant 0 : i32
    return %c0_i32, %c0_i32_0 : i32, i32
  }
  func.func @transform_2(%arg0: i32) -> (i32, i32) {
    %c0_i32 = arith.constant 0 : i32
    %c0_i32_0 = arith.constant 0 : i32
    %c0_i32_1 = arith.constant 0 : i32
    return %c0_i32, %c0_i32_0 : i32, i32
  }
  func.func @transform_3(%arg0: i32) -> (i32, i32) {
    %c0_i32 = arith.constant 0 : i32
    %c0_i32_0 = arith.constant 0 : i32
    %c0_i32_1 = arith.constant 0 : i32
    return %c0_i32, %c0_i32_0 : i32, i32
  }
  func.func @transform_4(%arg0: i32) -> (i32, i32) {
    %c0_i32 = arith.constant 0 : i32
    %c0_i32_0 = arith.constant 0 : i32
    %c0_i32_1 = arith.constant 0 : i32
    return %c0_i32, %c0_i32_0 : i32, i32
  }
  func.func @transform_5(%arg0: i32) -> (i32, i32, i32) {
    %c0_i32 = arith.constant 0 : i32
    %c0_i32_0 = arith.constant 0 : i32
    %c0_i32_1 = arith.constant 0 : i32
    return %arg0, %c0_i32, %c0_i32_0 : i32, i32, i32
  }
}

</mosaic_0001>

<llo_original>
// kernel: tpu_custom_call.1
$region0: #{tpu_custom_call.1}
  #allocation0 [shape = 'u32[]', space=smem, size = 0x4, offset = 0x4, fixed_abs, tag = 'smem constant byte address 0x4 - core index']
  #allocation1 [shape = 'u32[72,128]{1,0:T(1,128)}', space=vmem, size = 0x9000, scoped, tag = 'internal scratch']
  #allocation2 [shape = 'f32[149,256]{1,0:T(8,128)}', space=vmem, size = 0x26000, scoped, tag = 'scratch operand']
  #allocation3 [shape = 'f32[4,512]{1,0:T(4,128)}', space=vmem, size = 0x2000, scoped, tag = 'scratch operand']
  %s0 = inlined_call_operand.hbm [shape: f32[2,4,256], index: 0, kind: input, shape index: {}]
  %s1 = inlined_call_operand.hbm [shape: f32[36,256], index: 1, kind: input, shape index: {}]
  %s2 = inlined_call_operand.hbm [shape: f32[16,149], index: 2, kind: input, shape index: {}]
  %s3 = inlined_call_operand.vmem [shape: f32[8,8], index: 3, kind: input, shape index: {}]
  %s4 = inlined_call_operand.vmem [shape: f32[8,1], index: 4, kind: input, shape index: {}]
  %s5 = inlined_call_operand.hbm [shape: f32[2,8,256], index: 5, kind: output, shape index: {}]
  %s6 = sld [smem:[#allocation0]]
  $region65: #{tpu_custom_call.1} parent=0
    _
  %s8 = ssub.s32 1, %s6
  %s9 = scalar_select 0, %s8, %s6
  $region1: #{tpu_custom_call.1} parent=0
    #allocation4 [shape = 'u8[8192]{0}', space=vmem, size = 0x2000, scoped, tag = 'input window, operand 0']
    #allocation5 [shape = 's32[2]{0}', space=sflag, size = 0x8, scoped, tag = 'scoped memory for tpu_custom_call.1']
    #allocation6 [shape = 's32[2]{0}', space=sflag, size = 0x8, scoped, tag = 'scoped memory for tpu_custom_call.1']
    #allocation7 [shape = 'u8[40960]{0}', space=vmem, size = 0xa000, scoped, tag = 'input window, operand 1, single buffered']
    #allocation8 [shape = 's32[1]{0}', space=sflag, size = 0x4, scoped, tag = 'scoped memory for tpu_custom_call.1']
    #allocation9 [shape = 'u8[16384]{0}', space=vmem, size = 0x4000, scoped, tag = 'input window, operand 2, single buffered']
    #allocation10 [shape = 'u8[16384]{0}', space=vmem, size = 0x4000, scoped, tag = 'output window, operand 0']
    %10 = vsyncpa [#allocation5], 0
    %s11 = scalar_lea.sflag [#allocation5], 1
    %12 = vsyncpa %s11, 0
    %13 = vsyncpa [#allocation8], 0
    %14 = vsyncpa [#allocation6], 0
    %s15 = scalar_lea.sflag [#allocation6], 1
    %16 = vsyncpa %s15, 0
    loop: start=0, step=1, limit=4
    $region2: #{tpu_custom_call.1} parent=1 // loop_pre_header
      _
    $region3: #{tpu_custom_call.1} parent=1 // loop_header
      %s18 = sphi 0, %s22
      %p19 = scmp.ge.s32.totalorder %s18, 4
      %s28 = sphi 0, %s30
      %s31 = sphi 0, %s28
      %s32 = sphi 0, %s31
      %s48 = sphi 0, %s32
      %s52 = sphi 0, %s52
      %s54 = sphi 0, %s52
      %s55 = sphi 0, %s54
      %s69 = sphi 0, %s55
      %s73 = sphi 0, %s73
      %s75 = sphi 0, %s73
      %s76 = sphi 0, %s75
      %s90 = sphi 0, %s76
      %s94 = sphi 0, %s94
      %s96 = sphi 0, %s94
      %s97 = sphi 0, %s96
      %s111 = sphi 0, %s97
      %s115 = sphi 0, %s115
      %s117 = sphi 0, %s115
      %s118 = sphi 0, %s117
      %s132 = sphi 0, %s118
      %s138 = sphi 0, %s140
      %s141 = sphi 0, %s138
      %s142 = sphi 0, %s141
      %s158 = sphi 0, %s142
    $region4: #{tpu_custom_call.1} parent=1 // loop_header_branch
      %21 = sbr.rel (%p19) target = $region8
    $region5: #{tpu_custom_call.1} parent=1 // loop_body
      %s23 = ssub.s32 %s18, 1
      %s24 = ssub.s32 %s18, 2
      %s25 = sadd.s32 %s18, 1
      %s26 = ssub.s32 %s18, %s25
      %p27 = scmp.eq.s32.totalorder %s26, 0
      %s29 = sadd.s32 %s28, 1
      %s30 = scalar_select %p27, %s28, %s29
      %p33 = pneg %p27
      %p34 = scmp.eq.s32.totalorder %s18, 1
      %p35 = por %p33, %p34
      %p36 = scmp.ne.s32.totalorder %s28, %s31
      %p37 = scmp.eq.s32.totalorder %s18, 0
      %p38 = por %p36, %p37
      %p39 = scmp.ne.s32.totalorder %s28, %s31
      %p40 = scmp.eq.s32.totalorder %s23, 1
      %p41 = por %p39, %p40
      %p42 = scmp.ne.s32.totalorder %s31, %s32
      %p43 = scmp.eq.s32.totalorder %s23, 0
      %p44 = por %p42, %p43
      %p45 = scmp.ne.s32.totalorder %s31, %s32
      %p46 = scmp.eq.s32.totalorder %s24, 1
      %p47 = por %p45, %p46
      %p49 = scmp.ne.s32.totalorder %s32, %s48
      %p50 = scmp.eq.s32.totalorder %s24, 0
      %p51 = por %p49, %p50
      %s53 = sadd.s32 %s52, 1
      %p56 = scmp.eq.s32.totalorder %s18, 1
      %p57 = scmp.ne.s32.totalorder %s52, %s54
      %p58 = scmp.eq.s32.totalorder %s18, 0
      %p59 = por %p57, %p58
      %p60 = scmp.ne.s32.totalorder %s52, %s54
      %p61 = scmp.eq.s32.totalorder %s23, 1
      %p62 = por %p60, %p61
      %p63 = scmp.ne.s32.totalorder %s54, %s55
      %p64 = scmp.eq.s32.totalorder %s23, 0
      %p65 = por %p63, %p64
      %p66 = scmp.ne.s32.totalorder %s54, %s55
      %p67 = scmp.eq.s32.totalorder %s24, 1
      %p68 = por %p66, %p67
      %p70 = scmp.ne.s32.totalorder %s55, %s69
      %p71 = scmp.eq.s32.totalorder %s24, 0
      %p72 = por %p70, %p71
      %s74 = sadd.s32 %s73, 1
      %p77 = scmp.eq.s32.totalorder %s18, 1
      %p78 = scmp.ne.s32.totalorder %s73, %s75
      %p79 = scmp.eq.s32.totalorder %s18, 0
      %p80 = por %p78, %p79
      %p81 = scmp.ne.s32.totalorder %s73, %s75
      %p82 = scmp.eq.s32.totalorder %s23, 1
      %p83 = por %p81, %p82
      %p84 = scmp.ne.s32.totalorder %s75, %s76
      %p85 = scmp.eq.s32.totalorder %s23, 0
      %p86 = por %p84, %p85
      %p87 = scmp.ne.s32.totalorder %s75, %s76
      %p88 = scmp.eq.s32.totalorder %s24, 1
      %p89 = por %p87, %p88
      %p91 = scmp.ne.s32.totalorder %s76, %s90
      %p92 = scmp.eq.s32.totalorder %s24, 0
      %p93 = por %p91, %p92
      %s95 = sadd.s32 %s94, 1
      %p98 = scmp.eq.s32.totalorder %s18, 1
      %p99 = scmp.ne.s32.totalorder %s94, %s96
      %p100 = scmp.eq.s32.totalorder %s18, 0
      %p101 = por %p99, %p100
      %p102 = scmp.ne.s32.totalorder %s94, %s96
      %p103 = scmp.eq.s32.totalorder %s23, 1
      %p104 = por %p102, %p103
      %p105 = scmp.ne.s32.totalorder %s96, %s97
      %p106 = scmp.eq.s32.totalorder %s23, 0
      %p107 = por %p105, %p106
      %p108 = scmp.ne.s32.totalorder %s96, %s97
      %p109 = scmp.eq.s32.totalorder %s24, 1
      %p110 = por %p108, %p109
      %p112 = scmp.ne.s32.totalorder %s97, %s111
      %p113 = scmp.eq.s32.totalorder %s24, 0
      %p114 = por %p112, %p113
      %s116 = sadd.s32 %s115, 1
      %p119 = scmp.eq.s32.totalorder %s18, 1
      %p120 = scmp.ne.s32.totalorder %s115, %s117
      %p121 = scmp.eq.s32.totalorder %s18, 0
      %p122 = por %p120, %p121
      %p123 = scmp.ne.s32.totalorder %s115, %s117
      %p124 = scmp.eq.s32.totalorder %s23, 1
      %p125 = por %p123, %p124
      %p126 = scmp.ne.s32.totalorder %s117, %s118
      %p127 = scmp.eq.s32.totalorder %s23, 0
      %p128 = por %p126, %p127
      %p129 = scmp.ne.s32.totalorder %s117, %s118
      %p130 = scmp.eq.s32.totalorder %s24, 1
      %p131 = por %p129, %p130
      %p133 = scmp.ne.s32.totalorder %s118, %s132
      %p134 = scmp.eq.s32.totalorder %s24, 0
      %p135 = por %p133, %p134
      %s136 = ssub.s32 %s18, %s25
      %p137 = scmp.eq.s32.totalorder %s136, 0
      %s139 = sadd.s32 %s138, 1
      %s140 = scalar_select %p137, %s138, %s139
      %p143 = pneg %p137
      %p144 = scmp.eq.s32.totalorder %s18, 1
      %p145 = por %p143, %p144
      %p146 = scmp.ne.s32.totalorder %s138, %s141
      %p147 = scmp.eq.s32.totalorder %s18, 0
      %p148 = por %p146, %p147
      %p149 = scmp.ne.s32.totalorder %s138, %s141
      %p150 = scmp.eq.s32.totalorder %s23, 1
      %p151 = por %p149, %p150
      %p152 = scmp.ne.s32.totalorder %s141, %s142
      %p153 = scmp.eq.s32.totalorder %s23, 0
      %p154 = por %p152, %p153
      %p155 = scmp.ne.s32.totalorder %s141, %s142
      %p156 = scmp.eq.s32.totalorder %s24, 1
      %p157 = por %p155, %p156
      %p159 = scmp.ne.s32.totalorder %s142, %s158
      %p160 = scmp.eq.s32.totalorder %s24, 0
      %p161 = por %p159, %p160
      %p162 = scmp.le.s32.totalorder 1, %s18
      %p163 = scmp.lt.s32.totalorder %s18, 3
      %p164 = pnand %p162, %p163
      %p165 = pneg %p164
      // Predicated region
      $region9: #{tpu_custom_call.1} parent=5 // pred_check
        _
      $region10: #{tpu_custom_call.1} parent=5 // pred_check_branch
        %167 = sbr.rel (%p164) target = $region12
      $region11: #{tpu_custom_call.1} parent=5 // pred_region
        %s168 = ssub.s32 %s18, 1
        // Predicated region
        $region13: #{tpu_custom_call.1} parent=11 // pred_check
          %p169 = pneg %p65
        $region14: #{tpu_custom_call.1} parent=11 // pred_check_branch
          %171 = sbr.rel (%p169) target = $region16
        $region15: #{tpu_custom_call.1} parent=11 // pred_region
          %173 = vsyncadd [#allocation8], 0
          %s174 = sshll.u32 %s1, 4
          %s175 = int_to_ptr.hbm [resolvable:$true] %s174
          %s176 = sshll.u32 [#allocation7], 4
          %s177 = int_to_ptr.vmem [resolvable:$true] %s176
          %182 = dma.hbm_to_vmem [thread:$0]  %s175, 1280, %s177, [#allocation8], 256, 256, 16
        $region16: #{tpu_custom_call.1} parent=11 // pred_fallthru
          _
        // Predicated region
        $region17: #{tpu_custom_call.1} parent=11 // pred_check
          %p183 = pneg %p86
        $region18: #{tpu_custom_call.1} parent=11 // pred_check_branch
          %185 = sbr.rel (%p183) target = $region20
        $region19: #{tpu_custom_call.1} parent=11 // pred_region
          %187 = vsyncadd [#allocation8], 0
          %s188 = sshll.u32 %s2, 4
          %s189 = int_to_ptr.hbm [resolvable:$true] %s188
          %s190 = sshll.u32 [#allocation9], 4
          %s191 = int_to_ptr.vmem [resolvable:$true] %s190
          %196 = dma.hbm_to_vmem [thread:$0]  %s189, 512, %s191, [#allocation8], 256, 256, 16
        $region20: #{tpu_custom_call.1} parent=11 // pred_fallthru
          _
        // Predicated region
        $region21: #{tpu_custom_call.1} parent=11 // pred_check
          %p197 = pneg %p107
        $region22: #{tpu_custom_call.1} parent=11 // pred_check_branch
          %199 = sbr.rel (%p197) target = $region24
        $region23: #{tpu_custom_call.1} parent=11 // pred_region
          _
        $region24: #{tpu_custom_call.1} parent=11 // pred_fallthru
          _
        // Predicated region
        $region25: #{tpu_custom_call.1} parent=11 // pred_check
          %p200 = pneg %p128
        $region26: #{tpu_custom_call.1} parent=11 // pred_check_branch
          %202 = sbr.rel (%p200) target = $region28
        $region27: #{tpu_custom_call.1} parent=11 // pred_region
          _
        $region28: #{tpu_custom_call.1} parent=11 // pred_fallthru
          _
      $region12: #{tpu_custom_call.1} parent=5 // pred_fallthru
        _
      %p203 = scmp.lt.s32.totalorder %s18, 2
      // Predicated region
      $region29: #{tpu_custom_call.1} parent=5 // pred_check
        %p204 = pneg %p203
      $region30: #{tpu_custom_call.1} parent=5 // pred_check_branch
        %206 = sbr.rel (%p204) target = $region32
      $region31: #{tpu_custom_call.1} parent=5 // pred_region
        // Predicated region
        $region33: #{tpu_custom_call.1} parent=31 // pred_check
          %p207 = pneg %p38
        $region34: #{tpu_custom_call.1} parent=31 // pred_check_branch
          %209 = sbr.rel (%p207) target = $region36
        $region35: #{tpu_custom_call.1} parent=31 // pred_region
          %s210 = sand.u32 %s28, 1
          %s211 = scalar_lea.sflag [#allocation5], %s210
          %s212 = sand.u32 %s28, 1
          %s213 = smul.addr %s212, 8
          %s214 = scalar_lea.vmem [#allocation4], %s213
          %216 = vsyncadd %s211, 0
          %s217 = smul.addr %s18, 2
          %s218 = smul.addr %s217, 4
          %s219 = scalar_lea.hbm %s0, %s218
          %s221 = sshll.u32 %s219, 4
          %s222 = int_to_ptr.hbm [resolvable:$true] %s221
          %s223 = sshll.u32 %s214, 4
          %s224 = int_to_ptr.vmem [resolvable:$true] %s223
          %226 = dma.hbm_to_vmem [thread:$0]  %s222, 128, %s224, %s211
        $region36: #{tpu_custom_call.1} parent=31 // pred_fallthru
          _
      $region32: #{tpu_custom_call.1} parent=5 // pred_fallthru
        _
      %p227 = scmp.le.s32.totalorder 1, %s18
      %p228 = scmp.lt.s32.totalorder %s18, 3
      %p229 = pnand %p227, %p228
      %p230 = pneg %p229
      // Predicated region
      $region37: #{tpu_custom_call.1} parent=5 // pred_check
        _
      $region38: #{tpu_custom_call.1} parent=5 // pred_check_branch
        %232 = sbr.rel (%p229) target = $region40
      $region39: #{tpu_custom_call.1} parent=5 // pred_region
        %s233 = ssub.s32 %s18, 1
        %s234 = sand.u32 %s31, 1
        %s235 = scalar_lea.sflag [#allocation5], %s234
        %s236 = sand.u32 %s31, 1
        %s237 = smul.addr %s236, 8
        %s238 = scalar_lea.vmem [#allocation4], %s237
        // Predicated region
        $region41: #{tpu_custom_call.1} parent=39 // pred_check
          %p239 = pneg %p44
        $region42: #{tpu_custom_call.1} parent=39 // pred_check_branch
          %241 = sbr.rel (%p239) target = $region44
        $region43: #{tpu_custom_call.1} parent=39 // pred_region
          %243 = dma.done %s235, 128
        $region44: #{tpu_custom_call.1} parent=39 // pred_fallthru
          _
        // Predicated region
        $region45: #{tpu_custom_call.1} parent=39 // pred_check
          %p244 = pneg %p65
        $region46: #{tpu_custom_call.1} parent=39 // pred_check_branch
          %246 = sbr.rel (%p244) target = $region48
        $region47: #{tpu_custom_call.1} parent=39 // pred_region
          %248 = dma.done [#allocation8], 1280
        $region48: #{tpu_custom_call.1} parent=39 // pred_fallthru
          _
        // Predicated region
        $region49: #{tpu_custom_call.1} parent=39 // pred_check
          %p249 = pneg %p86
        $region50: #{tpu_custom_call.1} parent=39 // pred_check_branch
          %251 = sbr.rel (%p249) target = $region52
        $region51: #{tpu_custom_call.1} parent=39 // pred_region
          %253 = dma.done [#allocation8], 512
        $region52: #{tpu_custom_call.1} parent=39 // pred_fallthru
          _
        %s254 = sand.u32 %s31, 1
        %s255 = scalar_lea.sflag [#allocation5], %s254
        %s256 = sand.u32 %s31, 1
        %s257 = smul.addr %s256, 8
        %s258 = scalar_lea.vmem [#allocation4], %s257
        %p259 = pneg %p44
        %p260 = pneg %p41
        %p261 = pneg %p65
        %p262 = pneg %p62
        %p263 = pneg %p86
        %p264 = pneg %p83
        %p265 = pneg %p107
        %p266 = pneg %p104
        %p267 = pneg %p128
        %p268 = pneg %p125
        %p269 = pneg %p154
        %p270 = pneg %p151
        %s271 = sand.u32 %s141, 1
        %s272 = scalar_lea.sflag [#allocation6], %s271
        %s273 = sand.u32 %s141, 1
        %s274 = smul.addr %s273, 16
        %s275 = scalar_lea.vmem [#allocation10], %s274
        %v276 = vlaneseq
        %vm277 = vcmp.ge.s32.totalorder %v276, 0
        %vm278 = vcmp.lt.s32.totalorder %v276, 256
        %vm279 = vmand %vm277, %vm278
        %s280 = scalar_lea.vmem [#allocation2], 288
        %281 = vst.msk [vmem:[%s280] ss:$8 sm:$0x3] %vm279, 1.0
        %282 = vst.msk [vmem:[%s280] ss:$8 sm:$0x0] %vm279, 1.0
        %v283 = vld [vmem:[%s238] sm:$0xff]
        %284 = vst [vmem:[#allocation3] sm:$0xff] %v283
        %285 = vst [vmem:[#allocation3 + $0x8] sm:$0xff] %v283
        %v286 = vld [vmem:[#allocation3 + $0x4] sm:$0xff]
        %v287 = vld [vmem:[#allocation3 + $0xc] sm:$0xf]
        %v288 = vld [vmem:[#allocation7] ss:$8 sm:$0x3]
        %v290 = vperm.slane %v288, 0
        %v291 = vperm.slane %v288, 1
        %v292 = vrot.slane %v291, 4
        %vm293 = vcmask 1043456
        %v294 = vsel %vm293, %v290, %v292
        %295 = vrot.lane.b32.xlu0 %v294, 111
        %v296 = vpop.permute.xlu0 %295
        %v297 = vrot.slane %v296, 4
        %vm298 = vcmask 908288
        %v299 = vsel %vm298, %v297, %v296
        %v302 = vmul.f32 %v286, %v299
        %v303 = vmul.f32 %v287, %v297
        %306 = vst [vmem:[#allocation1] ss:$2 sm:$0xff] %v302
        %s307 = scalar_lea.vmem [#allocation1], 16
        %308 = vst [vmem:[%s307] ss:$2 sm:$0xff] %v303
        %v309 = vld.sshfl [vmem:[#allocation1] sm:$0xff pattern:$0x75316420]
        %v310 = vld.sshfl [vmem:[#allocation1 + $0x8] sm:$0xff pattern:$0x75316420]
        %v311 = vld.sshfl [vmem:[#allocation1 + $0x10] sm:$0xff pattern:$0x75316420]
        %312 = vrot.lane.b32.xlu0 %v309, 17
        %v313 = vpop.permute.xlu0 %312
        %314 = vrot.lane.b32.xlu0 %v310, 17
        %v315 = vpop.permute.xlu0 %314
        %316 = vrot.lane.b32.xlu0 %v311, 17
        %v317 = vpop.permute.xlu0 %316
        %vm318 = vcmask 138240
        %v319 = vsel %vm318, %v313, %v315
        %v320 = vsel %vm318, %v315, %v317
        %323 = vst [vmem:[#allocation2] sm:$0xf] %v319
        %324 = vst [vmem:[#allocation2 + $0x8] sm:$0xf] %v320
        %v325 = vld [vmem:[#allocation3 + $0x4] sm:$0xff]
        %v326 = vld [vmem:[#allocation3 + $0xc] sm:$0xf]
        %s327 = scalar_lea.vmem [#allocation7], 1
        %v328 = vld [vmem:[%s327] ss:$8 sm:$0x3]
        %v330 = vperm.slane %v328, 0
        %v331 = vperm.slane %v328, 1
        %v332 = vrot.slane %v331, 4
        %v333 = vsel %vm293, %v330, %v332
        %334 = vrot.lane.b32.xlu0 %v333, 112
        %v335 = vpop.permute.xlu0 %334
        %v336 = vrot.slane %v335, 4
        %vm337 = vcmask 916480
        %v338 = vsel %vm337, %v336, %v335
        %v341 = vmul.f32 %v325, %v338
        %v342 = vmul.f32 %v326, %v336
        %s345 = scalar_lea.vmem [#allocation1], 1
        %346 = vst [vmem:[%s345] ss:$2 sm:$0xff] %v341
        %s347 = scalar_lea.vmem [#allocation1], 17
        %348 = vst [vmem:[%s347] ss:$2 sm:$0xff] %v342
        %v349 = vld.sshfl [vmem:[#allocation1] sm:$0xff pattern:$0x75316420]
        %v350 = vld.sshfl [vmem:[#allocation1 + $0x8] sm:$0xff pattern:$0x75316420]
        %v351 = vld.sshfl [vmem:[#allocation1 + $0x10] sm:$0xff pattern:$0x75316420]
        %352 = vrot.lane.b32.xlu0 %v349, 16
        %v353 = vpop.permute.xlu0 %352
        %354 = vrot.lane.b32.xlu0 %v350, 16
        %v355 = vpop.permute.xlu0 %354
        %356 = vrot.lane.b32.xlu0 %v351, 16
        %v357 = vpop.permute.xlu0 %356
        %vm358 = vcmask 130048
        %v359 = vsel %vm358, %v353, %v355
        %v360 = vsel %vm358, %v355, %v357
        %363 = vst [vmem:[#allocation2] sm:$0xf0] %v359
        %364 = vst [vmem:[#allocation2 + $0x8] sm:$0xf0] %v360
        %v365 = vld [vmem:[#allocation3 + $0x4] sm:$0xff]
        %v366 = vld [vmem:[#allocation3 + $0xc] sm:$0xf]
        %s367 = scalar_lea.vmem [#allocation7], 2
        %v368 = vld [vmem:[%s367] ss:$8 sm:$0x3]
        %v370 = vperm.slane %v368, 0
        %v371 = vperm.slane %v368, 1
        %v372 = vrot.slane %v371, 4
        %v373 = vsel %vm293, %v370, %v372
        %374 = vrot.lane.b32.xlu0 %v373, 113
        %v375 = vpop.permute.xlu0 %374
        %v376 = vrot.slane %v375, 4
        %vm377 = vcmask 924672
        %v378 = vsel %vm377, %v376, %v375
        %v381 = vmul.f32 %v365, %v378
        %v382 = vmul.f32 %v366, %v376
        %385 = vst [vmem:[#allocation1] ss:$2 sm:$0xff] %v381
        %s386 = scalar_lea.vmem [#allocation1], 16
        %387 = vst [vmem:[%s386] ss:$2 sm:$0xff] %v382
        %v388 = vld.sshfl [vmem:[#allocation1] sm:$0xff pattern:$0x75316420]
        %v389 = vld.sshfl [vmem:[#allocation1 + $0x8] sm:$0xff pattern:$0x75316420]
        %v390 = vld.sshfl [vmem:[#allocation1 + $0x10] sm:$0xff pattern:$0x75316420]
        %391 = vrot.lane.b32.xlu0 %v388, 15
        %v392 = vpop.permute.xlu0 %391
        %393 = vrot.lane.b32.xlu0 %v389, 15
        %v394 = vpop.permute.xlu0 %393
        %395 = vrot.lane.b32.xlu0 %v390, 15
        %v396 = vpop.permute.xlu0 %395
        %vm397 = vcmask 121856
        %v398 = vsel %vm397, %v392, %v394
        %v399 = vsel %vm397, %v394, %v396
        %402 = vst [vmem:[#allocation2 + $0x10] sm:$0xf] %v398
        %403 = vst [vmem:[#allocation2 + $0x18] sm:$0xf] %v399
        %v404 = vld [vmem:[#allocation3 + $0x4] sm:$0xff]
        %v405 = vld [vmem:[#allocation3 + $0xc] sm:$0xf]
        %s406 = scalar_lea.vmem [#allocation7], 3
        %v407 = vld [vmem:[%s406] ss:$8 sm:$0x3]
        %v409 = vperm.slane %v407, 0
        %v410 = vperm.slane %v407, 1
        %v411 = vrot.slane %v410, 4
        %v412 = vsel %vm293, %v409, %v411
        %413 = vrot.lane.b32.xlu0 %v412, 127
        %v414 = vpop.permute.xlu0 %413
        %v415 = vrot.slane %v414, 4
        %vm416 = vcmask 1039360
        %v417 = vsel %vm416, %v415, %v414
        %v420 = vmul.f32 %v404, %v417
        %v421 = vmul.f32 %v405, %v415
        %s424 = scalar_lea.vmem [#allocation1], 1
        %425 = vst [vmem:[%s424] ss:$2 sm:$0xff] %v420
        %s426 = scalar_lea.vmem [#allocation1], 17
        %427 = vst [vmem:[%s426] ss:$2 sm:$0xff] %v421
        %v428 = vld.sshfl [vmem:[#allocation1] sm:$0xff pattern:$0x75316420]
        %v429 = vld.sshfl [vmem:[#allocation1 + $0x8] sm:$0xff pattern:$0x75316420]
        %v430 = vld.sshfl [vmem:[#allocation1 + $0x10] sm:$0xff pattern:$0x75316420]
        %431 = vrot.lane.b32.xlu0 %v428, 1
        %v432 = vpop.permute.xlu0 %431
        %433 = vrot.lane.b32.xlu0 %v429, 1
        %v434 = vpop.permute.xlu0 %433
        %435 = vrot.lane.b32.xlu0 %v430, 1
        %v436 = vpop.permute.xlu0 %435
        %vm437 = vcmask 7168
        %v438 = vsel %vm437, %v432, %v434
        %v439 = vsel %vm437, %v434, %v436
        %442 = vst [vmem:[#allocation2 + $0x10] sm:$0xf0] %v438
        %443 = vst [vmem:[#allocation2 + $0x18] sm:$0xf0] %v439
        %445 = vst [vmem:[#allocation1] ss:$2 sm:$0xff] %v283
        %v446 = vld.sshfl [vmem:[#allocation1] sm:$0xff pattern:$0x75316420]
        %v447 = vld.sshfl [vmem:[#allocation1 + $0x8] sm:$0xff pattern:$0x75316420]
        %450 = vst [vmem:[#allocation2 + $0x20] sm:$0xf] %v446
        %451 = vst [vmem:[#allocation2 + $0x28] sm:$0xf] %v447
        %v452 = vld [vmem:[#allocation3] sm:$0xff]
        %v453 = vld [vmem:[#allocation3 + $0x8] sm:$0xf]
        %s454 = scalar_lea.vmem [#allocation7], 5
        %v455 = vld [vmem:[%s454] ss:$8 sm:$0x3]
        %v457 = vperm.slane %v455, 0
        %v458 = vperm.slane %v455, 1
        %v459 = vrot.slane %v458, 4
        %v460 = vsel %vm293, %v457, %v459
        %461 = vrot.lane.b32.xlu0 %v460, 1
        %v462 = vpop.permute.xlu0 %461
        %v463 = vrot.slane %v462, 4
        %v464 = vsel %vm437, %v463, %v462
        %v467 = vmul.f32 %v452, %v464
        %v468 = vmul.f32 %v453, %v463
        %s471 = scalar_lea.vmem [#allocation1], 1
        %472 = vst [vmem:[%s471] ss:$2 sm:$0xff] %v467
        %s473 = scalar_lea.vmem [#allocation1], 17
        %474 = vst [vmem:[%s473] ss:$2 sm:$0xff] %v468
        %v475 = vld.sshfl [vmem:[#allocation1] sm:$0xff pattern:$0x75316420]
        %v476 = vld.sshfl [vmem:[#allocation1 + $0x8] sm:$0xff pattern:$0x75316420]
        %v477 = vld.sshfl [vmem:[#allocation1 + $0x10] sm:$0xff pattern:$0x75316420]
        %478 = vrot.lane.b32.xlu0 %v475, 127
        %v479 = vpop.permute.xlu0 %478
        %480 = vrot.lane.b32.xlu0 %v476, 127
        %v481 = vpop.permute.xlu0 %480
        %482 = vrot.lane.b32.xlu0 %v477, 127
        %v483 = vpop.permute.xlu0 %482
        %v484 = vsel %vm416, %v479, %v481
        %v485 = vsel %vm416, %v481, %v483
        %488 = vst [vmem:[#allocation2 + $0x20] sm:$0xf0] %v484
        %489 = vst [vmem:[#allocation2 + $0x28] sm:$0xf0] %v485
        %v490 = vld [vmem:[#allocation3] sm:$0xff]
        %v491 = vld [vmem:[#allocation3 + $0x8] sm:$0xf]
        %s492 = scalar_lea.vmem [#allocation7], 6
        %v493 = vld [vmem:[%s492] ss:$8 sm:$0x3]
        %v495 = vperm.slane %v493, 0
        %v496 = vperm.slane %v493, 1
        %v497 = vrot.slane %v496, 4
        %v498 = vsel %vm293, %v495, %v497
        %499 = vrot.lane.b32.xlu0 %v498, 15
        %v500 = vpop.permute.xlu0 %499
        %v501 = vrot.slane %v500, 4
        %v502 = vsel %vm397, %v501, %v500
        %v505 = vmul.f32 %v490, %v502
        %v506 = vmul.f32 %v491, %v501
        %509 = vst [vmem:[#allocation1] ss:$2 sm:$0xff] %v505
        %s510 = scalar_lea.vmem [#allocation1], 16
        %511 = vst [vmem:[%s510] ss:$2 sm:$0xff] %v506
        %v512 = vld.sshfl [vmem:[#allocation1] sm:$0xff pattern:$0x75316420]
        %v513 = vld.sshfl [vmem:[#allocation1 + $0x8] sm:$0xff pattern:$0x75316420]
        %v514 = vld.sshfl [vmem:[#allocation1 + $0x10] sm:$0xff pattern:$0x75316420]
        %515 = vrot.lane.b32.xlu0 %v512, 113
        %v516 = vpop.permute.xlu0 %515
        %517 = vrot.lane.b32.xlu0 %v513, 113
        %v518 = vpop.permute.xlu0 %517
        %519 = vrot.lane.b32.xlu0 %v514, 113
        %v520 = vpop.permute.xlu0 %519
        %v521 = vsel %vm377, %v516, %v518
        %v522 = vsel %vm377, %v518, %v520
        %525 = vst [vmem:[#allocation2 + $0x30] sm:$0xf] %v521
        %526 = vst [vmem:[#allocation2 + $0x38] sm:$0xf] %v522
        %v527 = vld [vmem:[#allocation3] sm:$0xff]
        %v528 = vld [vmem:[#allocation3 + $0x8] sm:$0xf]
        %s529 = scalar_lea.vmem [#allocation7], 7
        %v530 = vld [vmem:[%s529] ss:$8 sm:$0x3]
        %v532 = vperm.slane %v530, 0
        %v533 = vperm.slane %v530, 1
        %v534 = vrot.slane %v533, 4
        %v535 = vsel %vm293, %v532, %v534
        %536 = vrot.lane.b32.xlu0 %v535, 16
        %v537 = vpop.permute.xlu0 %536
        %v538 = vrot.slane %v537, 4
        %v539 = vsel %vm358, %v538, %v537
        %v542 = vmul.f32 %v527, %v539
        %v543 = vmul.f32 %v528, %v538
        %s546 = scalar_lea.vmem [#allocation1], 1
        %547 = vst [vmem:[%s546] ss:$2 sm:$0xff] %v542
        %s548 = scalar_lea.vmem [#allocation1], 17
        %549 = vst [vmem:[%s548] ss:$2 sm:$0xff] %v543
        %v550 = vld.sshfl [vmem:[#allocation1] sm:$0xff pattern:$0x75316420]
        %v551 = vld.sshfl [vmem:[#allocation1 + $0x8] sm:$0xff pattern:$0x75316420]
        %v552 = vld.sshfl [vmem:[#allocation1 + $0x10] sm:$0xff pattern:$0x75316420]
        %553 = vrot.lane.b32.xlu0 %v550, 112
        %v554 = vpop.permute.xlu0 %553
        %555 = vrot.lane.b32.xlu0 %v551, 112
        %v556 = vpop.permute.xlu0 %555
        %557 = vrot.lane.b32.xlu0 %v552, 112
        %v558 = vpop.permute.xlu0 %557
        %v559 = vsel %vm337, %v554, %v556
        %v560 = vsel %vm337, %v556, %v558
        %563 = vst [vmem:[#allocation2 + $0x30] sm:$0xf0] %v559
        %564 = vst [vmem:[#allocation2 + $0x38] sm:$0xf0] %v560
        %v565 = vld [vmem:[#allocation3] sm:$0xff]
        %v566 = vld [vmem:[#allocation3 + $0x8] sm:$0xf]
        %s567 = scalar_lea.vmem [#allocation7], 16
        %v568 = vld [vmem:[%s567] ss:$8 sm:$0x3]
        %v570 = vperm.slane %v568, 0
        %v571 = vperm.slane %v568, 1
        %v572 = vrot.slane %v571, 4
        %v573 = vsel %vm293, %v570, %v572
        %574 = vrot.lane.b32.xlu0 %v573, 17
        %v575 = vpop.permute.xlu0 %574
        %v576 = vrot.slane %v575, 4
        %v577 = vsel %vm318, %v576, %v575
        %v580 = vmul.f32 %v565, %v577
        %v581 = vmul.f32 %v566, %v576
        %584 = vst [vmem:[#allocation1] ss:$2 sm:$0xff] %v580
        %s585 = scalar_lea.vmem [#allocation1], 16
        %586 = vst [vmem:[%s585] ss:$2 sm:$0xff] %v581
        %v587 = vld.sshfl [vmem:[#allocation1] sm:$0xff pattern:$0x75316420]
        %v588 = vld.sshfl [vmem:[#allocation1 + $0x8] sm:$0xff pattern:$0x75316420]
        %v589 = vld.sshfl [vmem:[#allocation1 + $0x10] sm:$0xff pattern:$0x75316420]
        %590 = vrot.lane.b32.xlu0 %v587, 111
        %v591 = vpop.permute.xlu0 %590
        %592 = vrot.lane.b32.xlu0 %v588, 111
        %v593 = vpop.permute.xlu0 %592
        %594 = vrot.lane.b32.xlu0 %v589, 111
        %v595 = vpop.permute.xlu0 %594
        %v596 = vsel %vm298, %v591, %v593
        %v597 = vsel %vm298, %v593, %v595
        %600 = vst [vmem:[#allocation2 + $0x40] sm:$0xf] %v596
        %601 = vst [vmem:[#allocation2 + $0x48] sm:$0xf] %v597
        %v602 = vld [vmem:[#allocation3 + $0x4] sm:$0xff]
        %v603 = vld [vmem:[#allocation3 + $0xc] sm:$0xf]
        %s604 = scalar_lea.vmem [#allocation7], 17
        %v605 = vld [vmem:[%s604] ss:$8 sm:$0x3]
        %v607 = vperm.slane %v605, 0
        %v608 = vperm.slane %v605, 1
        %v609 = vrot.slane %v608, 4
        %v610 = vsel %vm293, %v607, %v609
        %611 = vrot.lane.b32.xlu0 %v610, 77
        %v612 = vpop.permute.xlu0 %611
        %v613 = vrot.slane %v612, 4
        %vm614 = vcmask 629760
        %v615 = vsel %vm614, %v613, %v612
        %v618 = vmul.f32 %v602, %v615
        %v619 = vmul.f32 %v603, %v613
        %s622 = scalar_lea.vmem [#allocation1], 1
        %623 = vst [vmem:[%s622] ss:$2 sm:$0xff] %v618
        %s624 = scalar_lea.vmem [#allocation1], 17
        %625 = vst [vmem:[%s624] ss:$2 sm:$0xff] %v619
        %v626 = vld.sshfl [vmem:[#allocation1] sm:$0xff pattern:$0x75316420]
        %v627 = vld.sshfl [vmem:[#allocation1 + $0x8] sm:$0xff pattern:$0x75316420]
        %v628 = vld.sshfl [vmem:[#allocation1 + $0x10] sm:$0xff pattern:$0x75316420]
        %629 = vrot.lane.b32.xlu0 %v626, 51
        %v630 = vpop.permute.xlu0 %629
        %631 = vrot.lane.b32.xlu0 %v627, 51
        %v632 = vpop.permute.xlu0 %631
        %633 = vrot.lane.b32.xlu0 %v628, 51
        %v634 = vpop.permute.xlu0 %633
        %vm635 = vcmask 416768
        %v636 = vsel %vm635, %v630, %v632
        %v637 = vsel %vm635, %v632, %v634
        %640 = vst [vmem:[#allocation2 + $0x40] sm:$0xf0] %v636
        %641 = vst [vmem:[#allocation2 + $0x48] sm:$0xf0] %v637
        %v642 = vld [vmem:[#allocation3 + $0x4] sm:$0xff]
        %v643 = vld [vmem:[#allocation3 + $0xc] sm:$0xf]
        %s644 = scalar_lea.vmem [#allocation7], 18
        %v645 = vld [vmem:[%s644] ss:$8 sm:$0x3]
        %v647 = vperm.slane %v645, 0
        %v648 = vperm.slane %v645, 1
        %v649 = vrot.slane %v648, 4
        %v650 = vsel %vm293, %v647, %v649
        %651 = vrot.lane.b32.xlu0 %v650, 80
        %v652 = vpop.permute.xlu0 %651
        %v653 = vrot.slane %v652, 4
        %vm654 = vcmask 654336
        %v655 = vsel %vm654, %v653, %v652
        %v658 = vmul.f32 %v642, %v655
        %v659 = vmul.f32 %v643, %v653
        %662 = vst [vmem:[#allocation1] ss:$2 sm:$0xff] %v658
        %s663 = scalar_lea.vmem [#allocation1], 16
        %664 = vst [vmem:[%s663] ss:$2 sm:$0xff] %v659
        %v665 = vld.sshfl [vmem:[#allocation1] sm:$0xff pattern:$0x75316420]
        %v666 = vld.sshfl [vmem:[#allocation1 + $0x8] sm:$0xff pattern:$0x75316420]
        %v667 = vld.sshfl [vmem:[#allocation1 + $0x10] sm:$0xff pattern:$0x75316420]
        %668 = vrot.lane.b32.xlu0 %v665, 48
        %v669 = vpop.permute.xlu0 %668
        %670 = vrot.lane.b32.xlu0 %v666, 48
        %v671 = vpop.permute.xlu0 %670
        %672 = vrot.lane.b32.xlu0 %v667, 48
        %v673 = vpop.permute.xlu0 %672
        %vm674 = vcmask 392192
        %v675 = vsel %vm674, %v669, %v671
        %v676 = vsel %vm674, %v671, %v673
        %679 = vst [vmem:[#allocation2 + $0x50] sm:$0xf] %v675
        %680 = vst [vmem:[#allocation2 + $0x58] sm:$0xf] %v676
        %v681 = vld [vmem:[#allocation3 + $0x4] sm:$0xff]
        %v682 = vld [vmem:[#allocation3 + $0xc] sm:$0xf]
        %s683 = scalar_lea.vmem [#allocation7], 19
        %v684 = vld [vmem:[%s683] ss:$8 sm:$0x3]
        %v686 = vperm.slane %v684, 0
        %v687 = vperm.slane %v684, 1
        %v688 = vrot.slane %v687, 4
        %v689 = vsel %vm293, %v686, %v688
        %690 = vrot.lane.b32.xlu0 %v689, 83
        %v691 = vpop.permute.xlu0 %690
        %v692 = vrot.slane %v691, 4
        %vm693 = vcmask 678912
        %v694 = vsel %vm693, %v692, %v691
        %v697 = vmul.f32 %v681, %v694
        %v698 = vmul.f32 %v682, %v692
        %s701 = scalar_lea.vmem [#allocation1], 1
        %702 = vst [vmem:[%s701] ss:$2 sm:$0xff] %v697
        %s703 = scalar_lea.vmem [#allocation1], 17
        %704 = vst [vmem:[%s703] ss:$2 sm:$0xff] %v698
        %v705 = vld.sshfl [vmem:[#allocation1] sm:$0xff pattern:$0x75316420]
        %v706 = vld.sshfl [vmem:[#allocation1 + $0x8] sm:$0xff pattern:$0x75316420]
        %v707 = vld.sshfl [vmem:[#allocation1 + $0x10] sm:$0xff pattern:$0x75316420]
        %708 = vrot.lane.b32.xlu0 %v705, 45
        %v709 = vpop.permute.xlu0 %708
        %710 = vrot.lane.b32.xlu0 %v706, 45
        %v711 = vpop.permute.xlu0 %710
        %712 = vrot.lane.b32.xlu0 %v707, 45
        %v713 = vpop.permute.xlu0 %712
        %vm714 = vcmask 367616
        %v715 = vsel %vm714, %v709, %v711
        %v716 = vsel %vm714, %v711, %v713
        %719 = vst [vmem:[#allocation2 + $0x50] sm:$0xf0] %v715
        %720 = vst [vmem:[#allocation2 + $0x58] sm:$0xf0] %v716
        %v721 = vld [vmem:[#allocation3 + $0x4] sm:$0xff]
        %v722 = vld [vmem:[#allocation3 + $0xc] sm:$0xf]
        %s723 = scalar_lea.vmem [#allocation7], 20
        %v724 = vld [vmem:[%s723] ss:$8 sm:$0x3]
        %v726 = vperm.slane %v724, 0
        %v727 = vperm.slane %v724, 1
        %v728 = vrot.slane %v727, 4
        %v729 = vsel %vm293, %v726, %v728
        %730 = vrot.lane.b32.xlu0 %v729, 125
        %v731 = vpop.permute.xlu0 %730
        %v732 = vrot.slane %v731, 4
        %vm733 = vcmask 1022976
        %v734 = vsel %vm733, %v732, %v731
        %v737 = vmul.f32 %v721, %v734
        %v738 = vmul.f32 %v722, %v732
        %741 = vst [vmem:[#allocation1] ss:$2 sm:$0xff] %v737
        %s742 = scalar_lea.vmem [#allocation1], 16
        %743 = vst [vmem:[%s742] ss:$2 sm:$0xff] %v738
        %v744 = vld.sshfl [vmem:[#allocation1] sm:$0xff pattern:$0x75316420]
        %v745 = vld.sshfl [vmem:[#allocation1 + $0x8] sm:$0xff pattern:$0x75316420]
        %v746 = vld.sshfl [vmem:[#allocation1 + $0x10] sm:$0xff pattern:$0x75316420]
        %747 = vrot.lane.b32.xlu0 %v744, 3
        %v748 = vpop.permute.xlu0 %747
        %749 = vrot.lane.b32.xlu0 %v745, 3
        %v750 = vpop.permute.xlu0 %749
        %751 = vrot.lane.b32.xlu0 %v746, 3
        %v752 = vpop.permute.xlu0 %751
        %vm753 = vcmask 23552
        %v754 = vsel %vm753, %v748, %v750
        %v755 = vsel %vm753, %v750, %v752
        %758 = vst [vmem:[#allocation2 + $0x60] sm:$0xf] %v754
        %759 = vst [vmem:[#allocation2 + $0x68] sm:$0xf] %v755
        %s760 = scalar_lea.vmem [#allocation1], 1
        %761 = vst [vmem:[%s760] ss:$2 sm:$0xff] %v283
        %v762 = vld.sshfl [vmem:[#allocation1] sm:$0xff pattern:$0x75316420]
        %v763 = vld.sshfl [vmem:[#allocation1 + $0x8] sm:$0xff pattern:$0x75316420]
        %766 = vst [vmem:[#allocation2 + $0x60] sm:$0xf0] %v762
        %767 = vst [vmem:[#allocation2 + $0x68] sm:$0xf0] %v763
        %v768 = vld [vmem:[#allocation3] sm:$0xff]
        %v769 = vld [vmem:[#allocation3 + $0x8] sm:$0xf]
        %s770 = scalar_lea.vmem [#allocation7], 22
        %v771 = vld [vmem:[%s770] ss:$8 sm:$0x3]
        %v773 = vperm.slane %v771, 0
        %v774 = vperm.slane %v771, 1
        %v775 = vrot.slane %v774, 4
        %v776 = vsel %vm293, %v773, %v775
        %777 = vrot.lane.b32.xlu0 %v776, 3
        %v778 = vpop.permute.xlu0 %777
        %v779 = vrot.slane %v778, 4
        %v780 = vsel %vm753, %v779, %v778
        %v783 = vmul.f32 %v768, %v780
        %v784 = vmul.f32 %v769, %v779
        %787 = vst [vmem:[#allocation1] ss:$2 sm:$0xff] %v783
        %s788 = scalar_lea.vmem [#allocation1], 16
        %789 = vst [vmem:[%s788] ss:$2 sm:$0xff] %v784
        %v790 = vld.sshfl [vmem:[#allocation1] sm:$0xff pattern:$0x75316420]
        %v791 = vld.sshfl [vmem:[#allocation1 + $0x8] sm:$0xff pattern:$0x75316420]
        %v792 = vld.sshfl [vmem:[#allocation1 + $0x10] sm:$0xff pattern:$0x75316420]
        %793 = vrot.lane.b32.xlu0 %v790, 125
        %v794 = vpop.permute.xlu0 %793
        %795 = vrot.lane.b32.xlu0 %v791, 125
        %v796 = vpop.permute.xlu0 %795
        %797 = vrot.lane.b32.xlu0 %v792, 125
        %v798 = vpop.permute.xlu0 %797
        %v799 = vsel %vm733, %v794, %v796
        %v800 = vsel %vm733, %v796, %v798
        %803 = vst [vmem:[#allocation2 + $0x70] sm:$0xf] %v799
        %804 = vst [vmem:[#allocation2 + $0x78] sm:$0xf] %v800
        %v805 = vld [vmem:[#allocation3] sm:$0xff]
        %v806 = vld [vmem:[#allocation3 + $0x8] sm:$0xf]
        %s807 = scalar_lea.vmem [#allocation7], 23
        %v808 = vld [vmem:[%s807] ss:$8 sm:$0x3]
        %v810 = vperm.slane %v808, 0
        %v811 = vperm.slane %v808, 1
        %v812 = vrot.slane %v811, 4
        %v813 = vsel %vm293, %v810, %v812
        %814 = vrot.lane.b32.xlu0 %v813, 45
        %v815 = vpop.permute.xlu0 %814
        %v816 = vrot.slane %v815, 4
        %v817 = vsel %vm714, %v816, %v815
        %v820 = vmul.f32 %v805, %v817
        %v821 = vmul.f32 %v806, %v816
        %s824 = scalar_lea.vmem [#allocation1], 1
        %825 = vst [vmem:[%s824] ss:$2 sm:$0xff] %v820
        %s826 = scalar_lea.vmem [#allocation1], 17
        %827 = vst [vmem:[%s826] ss:$2 sm:$0xff] %v821
        %v828 = vld.sshfl [vmem:[#allocation1] sm:$0xff pattern:$0x75316420]
        %v829 = vld.sshfl [vmem:[#allocation1 + $0x8] sm:$0xff pattern:$0x75316420]
        %v830 = vld.sshfl [vmem:[#allocation1 + $0x10] sm:$0xff pattern:$0x75316420]
        %831 = vrot.lane.b32.xlu0 %v828, 83
        %v832 = vpop.permute.xlu0 %831
        %833 = vrot.lane.b32.xlu0 %v829, 83
        %v834 = vpop.permute.xlu0 %833
        %835 = vrot.lane.b32.xlu0 %v830, 83
        %v836 = vpop.permute.xlu0 %835
        %v837 = vsel %vm693, %v832, %v834
        %v838 = vsel %vm693, %v834, %v836
        %841 = vst [vmem:[#allocation2 + $0x70] sm:$0xf0] %v837
        %842 = vst [vmem:[#allocation2 + $0x78] sm:$0xf0] %v838
        %v843 = vld [vmem:[#allocation3] sm:$0xff]
        %v844 = vld [vmem:[#allocation3 + $0x8] sm:$0xf]
        %s845 = scalar_lea.vmem [#allocation7], 32
        %v846 = vld [vmem:[%s845] ss:$8 sm:$0x3]
        %v848 = vperm.slane %v846, 0
        %v849 = vperm.slane %v846, 1
        %v850 = vrot.slane %v849, 4
        %v851 = vsel %vm293, %v848, %v850
        %852 = vrot.lane.b32.xlu0 %v851, 48
        %v853 = vpop.permute.xlu0 %852
        %v854 = vrot.slane %v853, 4
        %v855 = vsel %vm674, %v854, %v853
        %v858 = vmul.f32 %v843, %v855
        %v859 = vmul.f32 %v844, %v854
        %862 = vst [vmem:[#allocation1] ss:$2 sm:$0xff] %v858
        %s863 = scalar_lea.vmem [#allocation1], 16
        %864 = vst [vmem:[%s863] ss:$2 sm:$0xff] %v859
        %v865 = vld.sshfl [vmem:[#allocation1] sm:$0xff pattern:$0x75316420]
        %v866 = vld.sshfl [vmem:[#allocation1 + $0x8] sm:$0xff pattern:$0x75316420]
        %v867 = vld.sshfl [vmem:[#allocation1 + $0x10] sm:$0xff pattern:$0x75316420]
        %868 = vrot.lane.b32.xlu0 %v865, 80
        %v869 = vpop.permute.xlu0 %868
        %870 = vrot.lane.b32.xlu0 %v866, 80
        %v871 = vpop.permute.xlu0 %870
        %872 = vrot.lane.b32.xlu0 %v867, 80
        %v873 = vpop.permute.xlu0 %872
        %v874 = vsel %vm654, %v869, %v871
        %v875 = vsel %vm654, %v871, %v873
        %878 = vst [vmem:[#allocation2 + $0x80] sm:$0xf] %v874
        %879 = vst [vmem:[#allocation2 + $0x88] sm:$0xf] %v875
        %v880 = vld [vmem:[#allocation3] sm:$0xff]
        %v881 = vld [vmem:[#allocation3 + $0x8] sm:$0xf]
        %s882 = scalar_lea.vmem [#allocation7], 33
        %v883 = vld [vmem:[%s882] ss:$8 sm:$0x3]
        %v885 = vperm.slane %v883, 0
        %v886 = vperm.slane %v883, 1
        %v887 = vrot.slane %v886, 4
        %v888 = vsel %vm293, %v885, %v887
        %889 = vrot.lane.b32.xlu0 %v888, 51
        %v890 = vpop.permute.xlu0 %889
        %v891 = vrot.slane %v890, 4
        %v892 = vsel %vm635, %v891, %v890
        %v895 = vmul.f32 %v880, %v892
        %v896 = vmul.f32 %v881, %v891
        %s899 = scalar_lea.vmem [#allocation1], 1
        %900 = vst [vmem:[%s899] ss:$2 sm:$0xff] %v895
        %s901 = scalar_lea.vmem [#allocation1], 17
        %902 = vst [vmem:[%s901] ss:$2 sm:$0xff] %v896
        %v903 = vld.sshfl [vmem:[#allocation1] sm:$0xff pattern:$0x75316420]
        %v904 = vld.sshfl [vmem:[#allocation1 + $0x8] sm:$0xff pattern:$0x75316420]
        %v905 = vld.sshfl [vmem:[#allocation1 + $0x10] sm:$0xff pattern:$0x75316420]
        %906 = vrot.lane.b32.xlu0 %v903, 77
        %v907 = vpop.permute.xlu0 %906
        %908 = vrot.lane.b32.xlu0 %v904, 77
        %v909 = vpop.permute.xlu0 %908
        %910 = vrot.lane.b32.xlu0 %v905, 77
        %v911 = vpop.permute.xlu0 %910
        %v912 = vsel %vm614, %v907, %v909
        %v913 = vsel %vm614, %v909, %v911
        %916 = vst [vmem:[#allocation2 + $0x80] sm:$0xf0] %v912
        %917 = vst [vmem:[#allocation2 + $0x88] sm:$0xf0] %v913
        %v918 = vld [vmem:[#allocation3 + $0x4] sm:$0xff]
        %v919 = vld [vmem:[#allocation3 + $0xc] sm:$0xf]
        %s920 = scalar_lea.vmem [#allocation7], 34
        %v921 = vld [vmem:[%s920] ss:$8 sm:$0x3]
        %v923 = vperm.slane %v921, 0
        %v924 = vperm.slane %v921, 1
        %v925 = vrot.slane %v924, 4
        %v926 = vsel %vm293, %v923, %v925
        %927 = vrot.lane.b32.xlu0 %v926, 43
        %v928 = vpop.permute.xlu0 %927
        %v929 = vrot.slane %v928, 4
        %vm930 = vcmask 351232
        %v931 = vsel %vm930, %v929, %v928
        %v934 = vmul.f32 %v918, %v931
        %v935 = vmul.f32 %v919, %v929
        %938 = vst [vmem:[#allocation1] ss:$2 sm:$0xff] %v934
        %s939 = scalar_lea.vmem [#allocation1], 16
        %940 = vst [vmem:[%s939] ss:$2 sm:$0xff] %v935
        %v941 = vld.sshfl [vmem:[#allocation1] sm:$0xff pattern:$0x75316420]
        %v942 = vld.sshfl [vmem:[#allocation1 + $0x8] sm:$0xff pattern:$0x75316420]
        %v943 = vld.sshfl [vmem:[#allocation1 + $0x10] sm:$0xff pattern:$0x75316420]
        %944 = vrot.lane.b32.xlu0 %v941, 85
        %v945 = vpop.permute.xlu0 %944
        %946 = vrot.lane.b32.xlu0 %v942, 85
        %v947 = vpop.permute.xlu0 %946
        %948 = vrot.lane.b32.xlu0 %v943, 85
        %v949 = vpop.permute.xlu0 %948
        %vm950 = vcmask 695296
        %v951 = vsel %vm950, %v945, %v947
        %v952 = vsel %vm950, %v947, %v949
        %955 = vst [vmem:[#allocation2 + $0x90] sm:$0xf] %v951
        %956 = vst [vmem:[#allocation2 + $0x98] sm:$0xf] %v952
        %v957 = vld [vmem:[#allocation3 + $0x4] sm:$0xff]
        %v958 = vld [vmem:[#allocation3 + $0xc] sm:$0xf]
        %s959 = scalar_lea.vmem [#allocation7], 35
        %v960 = vld [vmem:[%s959] ss:$8 sm:$0x3]
        %v962 = vperm.slane %v960, 0
        %v963 = vperm.slane %v960, 1
        %v964 = vrot.slane %v963, 4
        %v965 = vsel %vm293, %v962, %v964
        %966 = vrot.lane.b32.xlu0 %v965, 48
        %v967 = vpop.permute.xlu0 %966
        %v968 = vrot.slane %v967, 4
        %v969 = vsel %vm674, %v968, %v967
        %v972 = vmul.f32 %v957, %v969
        %v973 = vmul.f32 %v958, %v968
        %s976 = scalar_lea.vmem [#allocation1], 1
        %977 = vst [vmem:[%s976] ss:$2 sm:$0xff] %v972
        %s978 = scalar_lea.vmem [#allocation1], 17
        %979 = vst [vmem:[%s978] ss:$2 sm:$0xff] %v973
        %v980 = vld.sshfl [vmem:[#allocation1] sm:$0xff pattern:$0x75316420]
        %v981 = vld.sshfl [vmem:[#allocation1 + $0x8] sm:$0xff pattern:$0x75316420]
        %v982 = vld.sshfl [vmem:[#allocation1 + $0x10] sm:$0xff pattern:$0x75316420]
        %983 = vrot.lane.b32.xlu0 %v980, 80
        %v984 = vpop.permute.xlu0 %983
        %985 = vrot.lane.b32.xlu0 %v981, 80
        %v986 = vpop.permute.xlu0 %985
        %987 = vrot.lane.b32.xlu0 %v982, 80
        %v988 = vpop.permute.xlu0 %987
        %v989 = vsel %vm654, %v984, %v986
        %v990 = vsel %vm654, %v986, %v988
        %993 = vst [vmem:[#allocation2 + $0x90] sm:$0xf0] %v989
        %994 = vst [vmem:[#allocation2 + $0x98] sm:$0xf0] %v990
        %v995 = vld [vmem:[#allocation3 + $0x4] sm:$0xff]
        %v996 = vld [vmem:[#allocation3 + $0xc] sm:$0xf]
        %s997 = scalar_lea.vmem [#allocation7], 36
        %v998 = vld [vmem:[%s997] ss:$8 sm:$0x3]
        %v1000 = vperm.slane %v998, 0
        %v1001 = vperm.slane %v998, 1
        %v1002 = vrot.slane %v1001, 4
        %v1003 = vsel %vm293, %v1000, %v1002
        %1004 = vrot.lane.b32.xlu0 %v1003, 53
        %v1005 = vpop.permute.xlu0 %1004
        %v1006 = vrot.slane %v1005, 4
        %vm1007 = vcmask 433152
        %v1008 = vsel %vm1007, %v1006, %v1005
        %v1011 = vmul.f32 %v995, %v1008
        %v1012 = vmul.f32 %v996, %v1006
        %1015 = vst [vmem:[#allocation1] ss:$2 sm:$0xff] %v1011
        %s1016 = scalar_lea.vmem [#allocation1], 16
        %1017 = vst [vmem:[%s1016] ss:$2 sm:$0xff] %v1012
        %v1018 = vld.sshfl [vmem:[#allocation1] sm:$0xff pattern:$0x75316420]
        %v1019 = vld.sshfl [vmem:[#allocation1 + $0x8] sm:$0xff pattern:$0x75316420]
        %v1020 = vld.sshfl [vmem:[#allocation1 + $0x10] sm:$0xff pattern:$0x75316420]
        %1021 = vrot.lane.b32.xlu0 %v1018, 75
        %v1022 = vpop.permute.xlu0 %1021
        %1023 = vrot.lane.b32.xlu0 %v1019, 75
        %v1024 = vpop.permute.xlu0 %1023
        %1025 = vrot.lane.b32.xlu0 %v1020, 75
        %v1026 = vpop.permute.xlu0 %1025
        %vm1027 = vcmask 613376
        %v1028 = vsel %vm1027, %v1022, %v1024
        %v1029 = vsel %vm1027, %v1024, %v1026
        %1032 = vst [vmem:[#allocation2 + $0xa0] sm:$0xf] %v1028
        %1033 = vst [vmem:[#allocation2 + $0xa8] sm:$0xf] %v1029
        %v1034 = vld [vmem:[#allocation3 + $0x4] sm:$0xff]
        %v1035 = vld [vmem:[#allocation3 + $0xc] sm:$0xf]
        %s1036 = scalar_lea.vmem [#allocation7], 37
        %v1037 = vld [vmem:[%s1036] ss:$8 sm:$0x3]
        %v1039 = vperm.slane %v1037, 0
        %v1040 = vperm.slane %v1037, 1
        %v1041 = vrot.slane %v1040, 4
        %v1042 = vsel %vm293, %v1039, %v1041
        %1043 = vrot.lane.b32.xlu0 %v1042, 123
        %v1044 = vpop.permute.xlu0 %1043
        %v1045 = vrot.slane %v1044, 4
        %vm1046 = vcmask 1006592
        %v1047 = vsel %vm1046, %v1045, %v1044
        %v1050 = vmul.f32 %v1034, %v1047
        %v1051 = vmul.f32 %v1035, %v1045
        %s1054 = scalar_lea.vmem [#allocation1], 1
        %1055 = vst [vmem:[%s1054] ss:$2 sm:$0xff] %v1050
        %s1056 = scalar_lea.vmem [#allocation1], 17
        %1057 = vst [vmem:[%s1056] ss:$2 sm:$0xff] %v1051
        %v1058 = vld.sshfl [vmem:[#allocation1] sm:$0xff pattern:$0x75316420]
        %v1059 = vld.sshfl [vmem:[#allocation1 + $0x8] sm:$0xff pattern:$0x75316420]
        %v1060 = vld.sshfl [vmem:[#allocation1 + $0x10] sm:$0xff pattern:$0x75316420]
        %1061 = vrot.lane.b32.xlu0 %v1058, 5
        %v1062 = vpop.permute.xlu0 %1061
        %1063 = vrot.lane.b32.xlu0 %v1059, 5
        %v1064 = vpop.permute.xlu0 %1063
        %1065 = vrot.lane.b32.xlu0 %v1060, 5
        %v1066 = vpop.permute.xlu0 %1065
        %vm1067 = vcmask 39936
        %v1068 = vsel %vm1067, %v1062, %v1064
        %v1069 = vsel %vm1067, %v1064, %v1066
        %1072 = vst [vmem:[#allocation2 + $0xa0] sm:$0xf0] %v1068
        %1073 = vst [vmem:[#allocation2 + $0xa8] sm:$0xf0] %v1069
        %1074 = vst [vmem:[#allocation1] ss:$2 sm:$0xff] %v283
        %v1075 = vld.sshfl [vmem:[#allocation1] sm:$0xff pattern:$0x75316420]
        %v1076 = vld.sshfl [vmem:[#allocation1 + $0x8] sm:$0xff pattern:$0x75316420]
        %1079 = vst [vmem:[#allocation2 + $0xb0] sm:$0xf] %v1075
        %1080 = vst [vmem:[#allocation2 + $0xb8] sm:$0xf] %v1076
        %v1081 = vld [vmem:[#allocation3] sm:$0xff]
        %v1082 = vld [vmem:[#allocation3 + $0x8] sm:$0xf]
        %s1083 = scalar_lea.vmem [#allocation7], 39
        %v1084 = vld [vmem:[%s1083] ss:$8 sm:$0x3]
        %v1086 = vperm.slane %v1084, 0
        %v1087 = vperm.slane %v1084, 1
        %v1088 = vrot.slane %v1087, 4
        %v1089 = vsel %vm293, %v1086, %v1088
        %1090 = vrot.lane.b32.xlu0 %v1089, 5
        %v1091 = vpop.permute.xlu0 %1090
        %v1092 = vrot.slane %v1091, 4
        %v1093 = vsel %vm1067, %v1092, %v1091
        %v1096 = vmul.f32 %v1081, %v1093
        %v1097 = vmul.f32 %v1082, %v1092
        %s1100 = scalar_lea.vmem [#allocation1], 1
        %1101 = vst [vmem:[%s1100] ss:$2 sm:$0xff] %v1096
        %s1102 = scalar_lea.vmem [#allocation1], 17
        %1103 = vst [vmem:[%s1102] ss:$2 sm:$0xff] %v1097
        %v1104 = vld.sshfl [vmem:[#allocation1] sm:$0xff pattern:$0x75316420]
        %v1105 = vld.sshfl [vmem:[#allocation1 + $0x8] sm:$0xff pattern:$0x75316420]
        %v1106 = vld.sshfl [vmem:[#allocation1 + $0x10] sm:$0xff pattern:$0x75316420]
        %1107 = vrot.lane.b32.xlu0 %v1104, 123
        %v1108 = vpop.permute.xlu0 %1107
        %1109 = vrot.lane.b32.xlu0 %v1105, 123
        %v1110 = vpop.permute.xlu0 %1109
        %1111 = vrot.lane.b32.xlu0 %v1106, 123
        %v1112 = vpop.permute.xlu0 %1111
        %v1113 = vsel %vm1046, %v1108, %v1110
        %v1114 = vsel %vm1046, %v1110, %v1112
        %1117 = vst [vmem:[#allocation2 + $0xb0] sm:$0xf0] %v1113
        %1118 = vst [vmem:[#allocation2 + $0xb8] sm:$0xf0] %v1114
        %v1119 = vld [vmem:[#allocation3] sm:$0xff]
        %v1120 = vld [vmem:[#allocation3 + $0x8] sm:$0xf]
        %s1121 = scalar_lea.vmem [#allocation7], 48
        %v1122 = vld [vmem:[%s1121] ss:$8 sm:$0x3]
        %v1124 = vperm.slane %v1122, 0
        %v1125 = vperm.slane %v1122, 1
        %v1126 = vrot.slane %v1125, 4
        %v1127 = vsel %vm293, %v1124, %v1126
        %1128 = vrot.lane.b32.xlu0 %v1127, 75
        %v1129 = vpop.permute.xlu0 %1128
        %v1130 = vrot.slane %v1129, 4
        %v1131 = vsel %vm1027, %v1130, %v1129
        %v1134 = vmul.f32 %v1119, %v1131
        %v1135 = vmul.f32 %v1120, %v1130
        %1138 = vst [vmem:[#allocation1] ss:$2 sm:$0xff] %v1134
        %s1139 = scalar_lea.vmem [#allocation1], 16
        %1140 = vst [vmem:[%s1139] ss:$2 sm:$0xff] %v1135
        %v1141 = vld.sshfl [vmem:[#allocation1] sm:$0xff pattern:$0x75316420]
        %v1142 = vld.sshfl [vmem:[#allocation1 + $0x8] sm:$0xff pattern:$0x75316420]
        %v1143 = vld.sshfl [vmem:[#allocation1 + $0x10] sm:$0xff pattern:$0x75316420]
        %1144 = vrot.lane.b32.xlu0 %v1141, 53
        %v1145 = vpop.permute.xlu0 %1144
        %1146 = vrot.lane.b32.xlu0 %v1142, 53
        %v1147 = vpop.permute.xlu0 %1146
        %1148 = vrot.lane.b32.xlu0 %v1143, 53
        %v1149 = vpop.permute.xlu0 %1148
        %v1150 = vsel %vm1007, %v1145, %v1147
        %v1151 = vsel %vm1007, %v1147, %v1149
        %1154 = vst [vmem:[#allocation2 + $0xc0] sm:$0xf] %v1150
        %1155 = vst [vmem:[#allocation2 + $0xc8] sm:$0xf] %v1151
        %v1156 = vld [vmem:[#allocation3] sm:$0xff]
        %v1157 = vld [vmem:[#allocation3 + $0x8] sm:$0xf]
        %s1158 = scalar_lea.vmem [#allocation7], 49
        %v1159 = vld [vmem:[%s1158] ss:$8 sm:$0x3]
        %v1161 = vperm.slane %v1159, 0
        %v1162 = vperm.slane %v1159, 1
        %v1163 = vrot.slane %v1162, 4
        %v1164 = vsel %vm293, %v1161, %v1163
        %1165 = vrot.lane.b32.xlu0 %v1164, 80
        %v1166 = vpop.permute.xlu0 %1165
        %v1167 = vrot.slane %v1166, 4
        %v1168 = vsel %vm654, %v1167, %v1166
        %v1171 = vmul.f32 %v1156, %v1168
        %v1172 = vmul.f32 %v1157, %v1167
        %s1175 = scalar_lea.vmem [#allocation1], 1
        %1176 = vst [vmem:[%s1175] ss:$2 sm:$0xff] %v1171
        %s1177 = scalar_lea.vmem [#allocation1], 17
        %1178 = vst [vmem:[%s1177] ss:$2 sm:$0xff] %v1172
        %v1179 = vld.sshfl [vmem:[#allocation1] sm:$0xff pattern:$0x75316420]
        %v1180 = vld.sshfl [vmem:[#allocation1 + $0x8] sm:$0xff pattern:$0x75316420]
        %v1181 = vld.sshfl [vmem:[#allocation1 + $0x10] sm:$0xff pattern:$0x75316420]
        %1182 = vrot.lane.b32.xlu0 %v1179, 48
        %v1183 = vpop.permute.xlu0 %1182
        %1184 = vrot.lane.b32.xlu0 %v1180, 48
        %v1185 = vpop.permute.xlu0 %1184
        %1186 = vrot.lane.b32.xlu0 %v1181, 48
        %v1187 = vpop.permute.xlu0 %1186
        %v1188 = vsel %vm674, %v1183, %v1185
        %v1189 = vsel %vm674, %v1185, %v1187
        %1192 = vst [vmem:[#allocation2 + $0xc0] sm:$0xf0] %v1188
        %1193 = vst [vmem:[#allocation2 + $0xc8] sm:$0xf0] %v1189
        %v1194 = vld [vmem:[#allocation3] sm:$0xff]
        %v1195 = vld [vmem:[#allocation3 + $0x8] sm:$0xf]
        %s1196 = scalar_lea.vmem [#allocation7], 50
        %v1197 = vld [vmem:[%s1196] ss:$8 sm:$0x3]
        %v1199 = vperm.slane %v1197, 0
        %v1200 = vperm.slane %v1197, 1
        %v1201 = vrot.slane %v1200, 4
        %v1202 = vsel %vm293, %v1199, %v1201
        %1203 = vrot.lane.b32.xlu0 %v1202, 85
        %v1204 = vpop.permute.xlu0 %1203
        %v1205 = vrot.slane %v1204, 4
        %v1206 = vsel %vm950, %v1205, %v1204
        %v1209 = vmul.f32 %v1194, %v1206
        %v1210 = vmul.f32 %v1195, %v1205
        %1213 = vst [vmem:[#allocation1] ss:$2 sm:$0xff] %v1209
        %s1214 = scalar_lea.vmem [#allocation1], 16
        %1215 = vst [vmem:[%s1214] ss:$2 sm:$0xff] %v1210
        %v1216 = vld.sshfl [vmem:[#allocation1] sm:$0xff pattern:$0x75316420]
        %v1217 = vld.sshfl [vmem:[#allocation1 + $0x8] sm:$0xff pattern:$0x75316420]
        %v1218 = vld.sshfl [vmem:[#allocation1 + $0x10] sm:$0xff pattern:$0x75316420]
        %1219 = vrot.lane.b32.xlu0 %v1216, 43
        %v1220 = vpop.permute.xlu0 %1219
        %1221 = vrot.lane.b32.xlu0 %v1217, 43
        %v1222 = vpop.permute.xlu0 %1221
        %1223 = vrot.lane.b32.xlu0 %v1218, 43
        %v1224 = vpop.permute.xlu0 %1223
        %v1225 = vsel %vm930, %v1220, %v1222
        %v1226 = vsel %vm930, %v1222, %v1224
        %1229 = vst [vmem:[#allocation2 + $0xd0] sm:$0xf] %v1225
        %1230 = vst [vmem:[#allocation2 + $0xd8] sm:$0xf] %v1226
        %v1231 = vld [vmem:[#allocation3] sm:$0xff]
        %v1232 = vld [vmem:[#allocation3 + $0x8] sm:$0xf]
        %s1233 = scalar_lea.vmem [#allocation7], 51
        %v1234 = vld [vmem:[%s1233] ss:$8 sm:$0x3]
        %v1236 = vperm.slane %v1234, 0
        %v1237 = vperm.slane %v1234, 1
        %v1238 = vrot.slane %v1237, 4
        %v1239 = vsel %vm293, %v1236, %v1238
        %1240 = vrot.lane.b32.xlu0 %v1239, 103
        %v1241 = vpop.permute.xlu0 %1240
        %v1242 = vrot.slane %v1241, 4
        %vm1243 = vcmask 842752
        %v1244 = vsel %vm1243, %v1242, %v1241
        %v1247 = vmul.f32 %v1231, %v1244
        %v1248 = vmul.f32 %v1232, %v1242
        %s1251 = scalar_lea.vmem [#allocation1], 1
        %1252 = vst [vmem:[%s1251] ss:$2 sm:$0xff] %v1247
        %s1253 = scalar_lea.vmem [#allocation1], 17
        %1254 = vst [vmem:[%s1253] ss:$2 sm:$0xff] %v1248
        %v1255 = vld.sshfl [vmem:[#allocation1] sm:$0xff pattern:$0x75316420]
        %v1256 = vld.sshfl [vmem:[#allocation1 + $0x8] sm:$0xff pattern:$0x75316420]
        %v1257 = vld.sshfl [vmem:[#allocation1 + $0x10] sm:$0xff pattern:$0x75316420]
        %1258 = vrot.lane.b32.xlu0 %v1255, 25
        %v1259 = vpop.permute.xlu0 %1258
        %1260 = vrot.lane.b32.xlu0 %v1256, 25
        %v1261 = vpop.permute.xlu0 %1260
        %1262 = vrot.lane.b32.xlu0 %v1257, 25
        %v1263 = vpop.permute.xlu0 %1262
        %vm1264 = vcmask 203776
        %v1265 = vsel %vm1264, %v1259, %v1261
        %v1266 = vsel %vm1264, %v1261, %v1263
        %1269 = vst [vmem:[#allocation2 + $0xd0] sm:$0xf0] %v1265
        %1270 = vst [vmem:[#allocation2 + $0xd8] sm:$0xf0] %v1266
        %v1271 = vld [vmem:[#allocation3] sm:$0xff]
        %v1272 = vld [vmem:[#allocation3 + $0x8] sm:$0xf]
        %s1273 = scalar_lea.vmem [#allocation7], 52
        %v1274 = vld [vmem:[%s1273] ss:$8 sm:$0x3]
        %v1276 = vperm.slane %v1274, 0
        %v1277 = vperm.slane %v1274, 1
        %v1278 = vrot.slane %v1277, 4
        %v1279 = vsel %vm293, %v1276, %v1278
        %1280 = vrot.lane.b32.xlu0 %v1279, 112
        %v1281 = vpop.permute.xlu0 %1280
        %v1282 = vrot.slane %v1281, 4
        %v1283 = vsel %vm337, %v1282, %v1281
        %v1286 = vmul.f32 %v1271, %v1283
        %v1287 = vmul.f32 %v1272, %v1282
        %1290 = vst [vmem:[#allocation1] ss:$2 sm:$0xff] %v1286
        %s1291 = scalar_lea.vmem [#allocation1], 16
        %1292 = vst [vmem:[%s1291] ss:$2 sm:$0xff] %v1287
        %v1293 = vld.sshfl [vmem:[#allocation1] sm:$0xff pattern:$0x75316420]
        %v1294 = vld.sshfl [vmem:[#allocation1 + $0x8] sm:$0xff pattern:$0x75316420]
        %v1295 = vld.sshfl [vmem:[#allocation1 + $0x10] sm:$0xff pattern:$0x75316420]
        %1296 = vrot.lane.b32.xlu0 %v1293, 16
        %v1297 = vpop.permute.xlu0 %1296
        %1298 = vrot.lane.b32.xlu0 %v1294, 16
        %v1299 = vpop.permute.xlu0 %1298
        %1300 = vrot.lane.b32.xlu0 %v1295, 16
        %v1301 = vpop.permute.xlu0 %1300
        %v1302 = vsel %vm358, %v1297, %v1299
        %v1303 = vsel %vm358, %v1299, %v1301
        %1306 = vst [vmem:[#allocation2 + $0xe0] sm:$0xf] %v1302
        %1307 = vst [vmem:[#allocation2 + $0xe8] sm:$0xf] %v1303
        %v1308 = vld [vmem:[#allocation3] sm:$0xff]
        %v1309 = vld [vmem:[#allocation3 + $0x8] sm:$0xf]
        %s1310 = scalar_lea.vmem [#allocation7], 53
        %v1311 = vld [vmem:[%s1310] ss:$8 sm:$0x3]
        %v1313 = vperm.slane %v1311, 0
        %v1314 = vperm.slane %v1311, 1
        %v1315 = vrot.slane %v1314, 4
        %v1316 = vsel %vm293, %v1313, %v1315
        %1317 = vrot.lane.b32.xlu0 %v1316, 121
        %v1318 = vpop.permute.xlu0 %1317
        %v1319 = vrot.slane %v1318, 4
        %vm1320 = vcmask 990208
        %v1321 = vsel %vm1320, %v1319, %v1318
        %v1324 = vmul.f32 %v1308, %v1321
        %v1325 = vmul.f32 %v1309, %v1319
        %s1328 = scalar_lea.vmem [#allocation1], 1
        %1329 = vst [vmem:[%s1328] ss:$2 sm:$0xff] %v1324
        %s1330 = scalar_lea.vmem [#allocation1], 17
        %1331 = vst [vmem:[%s1330] ss:$2 sm:$0xff] %v1325
        %v1332 = vld.sshfl [vmem:[#allocation1] sm:$0xff pattern:$0x75316420]
        %v1333 = vld.sshfl [vmem:[#allocation1 + $0x8] sm:$0xff pattern:$0x75316420]
        %v1334 = vld.sshfl [vmem:[#allocation1 + $0x10] sm:$0xff pattern:$0x75316420]
        %1335 = vrot.lane.b32.xlu0 %v1332, 7
        %v1336 = vpop.permute.xlu0 %1335
        %1337 = vrot.lane.b32.xlu0 %v1333, 7
        %v1338 = vpop.permute.xlu0 %1337
        %1339 = vrot.lane.b32.xlu0 %v1334, 7
        %v1340 = vpop.permute.xlu0 %1339
        %vm1341 = vcmask 56320
        %v1342 = vsel %vm1341, %v1336, %v1338
        %v1343 = vsel %vm1341, %v1338, %v1340
        %1346 = vst [vmem:[#allocation2 + $0xe0] sm:$0xf0] %v1342
        %1347 = vst [vmem:[#allocation2 + $0xe8] sm:$0xf0] %v1343
        %v1348 = vld [vmem:[#allocation3 + $0x4] sm:$0xff]
        %v1349 = vld [vmem:[#allocation3 + $0xc] sm:$0xf]
        %s1350 = scalar_lea.vmem [#allocation7], 54
        %v1351 = vld [vmem:[%s1350] ss:$8 sm:$0x3]
        %v1353 = vperm.slane %v1351, 0
        %v1354 = vperm.slane %v1351, 1
        %v1355 = vrot.slane %v1354, 4
        %v1356 = vsel %vm293, %v1353, %v1355
        %1357 = vrot.lane.b32.xlu0 %v1356, 119
        %v1358 = vpop.permute.xlu0 %1357
        %v1359 = vrot.slane %v1358, 4
        %vm1360 = vcmask 973824
        %v1361 = vsel %vm1360, %v1359, %v1358
        %v1364 = vmul.f32 %v1348, %v1361
        %v1365 = vmul.f32 %v1349, %v1359
        %1368 = vst [vmem:[#allocation1] ss:$2 sm:$0xff] %v1364
        %s1369 = scalar_lea.vmem [#allocation1], 16
        %1370 = vst [vmem:[%s1369] ss:$2 sm:$0xff] %v1365
        %v1371 = vld.sshfl [vmem:[#allocation1] sm:$0xff pattern:$0x75316420]
        %v1372 = vld.sshfl [vmem:[#allocation1 + $0x8] sm:$0xff pattern:$0x75316420]
        %v1373 = vld.sshfl [vmem:[#allocation1 + $0x10] sm:$0xff pattern:$0x75316420]
        %1374 = vrot.lane.b32.xlu0 %v1371, 9
        %v1375 = vpop.permute.xlu0 %1374
        %1376 = vrot.lane.b32.xlu0 %v1372, 9
        %v1377 = vpop.permute.xlu0 %1376
        %1378 = vrot.lane.b32.xlu0 %v1373, 9
        %v1379 = vpop.permute.xlu0 %1378
        %vm1380 = vcmask 72704
        %v1381 = vsel %vm1380, %v1375, %v1377
        %v1382 = vsel %vm1380, %v1377, %v1379
        %1385 = vst [vmem:[#allocation2 + $0xf0] sm:$0xf] %v1381
        %1386 = vst [vmem:[#allocation2 + $0xf8] sm:$0xf] %v1382
        %s1387 = scalar_lea.vmem [#allocation1], 1
        %1388 = vst [vmem:[%s1387] ss:$2 sm:$0xff] %v283
        %v1389 = vld.sshfl [vmem:[#allocation1] sm:$0xff pattern:$0x75316420]
        %v1390 = vld.sshfl [vmem:[#allocation1 + $0x8] sm:$0xff pattern:$0x75316420]
        %1393 = vst [vmem:[#allocation2 + $0xf0] sm:$0xf0] %v1389
        %1394 = vst [vmem:[#allocation2 + $0xf8] sm:$0xf0] %v1390
        %v1395 = vld [vmem:[#allocation3] sm:$0xff]
        %v1396 = vld [vmem:[#allocation3 + $0x8] sm:$0xf]
        %s1397 = scalar_lea.vmem [#allocation7], 64
        %v1398 = vld [vmem:[%s1397] ss:$8 sm:$0x3]
        %v1400 = vperm.slane %v1398, 0
        %v1401 = vperm.slane %v1398, 1
        %v1402 = vrot.slane %v1401, 4
        %v1403 = vsel %vm293, %v1400, %v1402
        %1404 = vrot.lane.b32.xlu0 %v1403, 9
        %v1405 = vpop.permute.xlu0 %1404
        %v1406 = vrot.slane %v1405, 4
        %v1407 = vsel %vm1380, %v1406, %v1405
        %v1410 = vmul.f32 %v1395, %v1407
        %v1411 = vmul.f32 %v1396, %v1406
        %1414 = vst [vmem:[#allocation1] ss:$2 sm:$0xff] %v1410
        %s1415 = scalar_lea.vmem [#allocation1], 16
        %1416 = vst [vmem:[%s1415] ss:$2 sm:$0xff] %v1411
        %v1417 = vld.sshfl [vmem:[#allocation1] sm:$0xff pattern:$0x75316420]
        %v1418 = vld.sshfl [vmem:[#allocation1 + $0x8] sm:$0xff pattern:$0x75316420]
        %v1419 = vld.sshfl [vmem:[#allocation1 + $0x10] sm:$0xff pattern:$0x75316420]
        %1420 = vrot.lane.b32.xlu0 %v1417, 119
        %v1421 = vpop.permute.xlu0 %1420
        %1422 = vrot.lane.b32.xlu0 %v1418, 119
        %v1423 = vpop.permute.xlu0 %1422
        %1424 = vrot.lane.b32.xlu0 %v1419, 119
        %v1425 = vpop.permute.xlu0 %1424
        %v1426 = vsel %vm1360, %v1421, %v1423
        %v1427 = vsel %vm1360, %v1423, %v1425
        %1430 = vst [vmem:[#allocation2 + $0x100] sm:$0xf] %v1426
        %1431 = vst [vmem:[#allocation2 + $0x108] sm:$0xf] %v1427
        %v1432 = vld [vmem:[#allocation3 + $0x4] sm:$0xff]
        %v1433 = vld [vmem:[#allocation3 + $0xc] sm:$0xf]
        %s1434 = scalar_lea.vmem [#allocation7], 65
        %v1435 = vld [vmem:[%s1434] ss:$8 sm:$0x3]
        %v1437 = vperm.slane %v1435, 0
        %v1438 = vperm.slane %v1435, 1
        %v1439 = vrot.slane %v1438, 4
        %v1440 = vsel %vm293, %v1437, %v1439
        %1441 = vrot.lane.b32.xlu0 %v1440, 7
        %v1442 = vpop.permute.xlu0 %1441
        %v1443 = vrot.slane %v1442, 4
        %v1444 = vsel %vm1341, %v1443, %v1442
        %v1447 = vmul.f32 %v1432, %v1444
        %v1448 = vmul.f32 %v1433, %v1443
        %s1451 = scalar_lea.vmem [#allocation1], 1
        %1452 = vst [vmem:[%s1451] ss:$2 sm:$0xff] %v1447
        %s1453 = scalar_lea.vmem [#allocation1], 17
        %1454 = vst [vmem:[%s1453] ss:$2 sm:$0xff] %v1448
        %v1455 = vld.sshfl [vmem:[#allocation1] sm:$0xff pattern:$0x75316420]
        %v1456 = vld.sshfl [vmem:[#allocation1 + $0x8] sm:$0xff pattern:$0x75316420]
        %v1457 = vld.sshfl [vmem:[#allocation1 + $0x10] sm:$0xff pattern:$0x75316420]
        %1458 = vrot.lane.b32.xlu0 %v1455, 121
        %v1459 = vpop.permute.xlu0 %1458
        %1460 = vrot.lane.b32.xlu0 %v1456, 121
        %v1461 = vpop.permute.xlu0 %1460
        %1462 = vrot.lane.b32.xlu0 %v1457, 121
        %v1463 = vpop.permute.xlu0 %1462
        %v1464 = vsel %vm1320, %v1459, %v1461
        %v1465 = vsel %vm1320, %v1461, %v1463
        %1468 = vst [vmem:[#allocation2 + $0x100] sm:$0xf0] %v1464
        %1469 = vst [vmem:[#allocation2 + $0x108] sm:$0xf0] %v1465
        %v1470 = vld [vmem:[#allocation3 + $0x4] sm:$0xff]
        %v1471 = vld [vmem:[#allocation3 + $0xc] sm:$0xf]
        %s1472 = scalar_lea.vmem [#allocation7], 66
        %v1473 = vld [vmem:[%s1472] ss:$8 sm:$0x3]
        %v1475 = vperm.slane %v1473, 0
        %v1476 = vperm.slane %v1473, 1
        %v1477 = vrot.slane %v1476, 4
        %v1478 = vsel %vm293, %v1475, %v1477
        %1479 = vrot.lane.b32.xlu0 %v1478, 16
        %v1480 = vpop.permute.xlu0 %1479
        %v1481 = vrot.slane %v1480, 4
        %v1482 = vsel %vm358, %v1481, %v1480
        %v1485 = vmul.f32 %v1470, %v1482
        %v1486 = vmul.f32 %v1471, %v1481
        %1489 = vst [vmem:[#allocation1] ss:$2 sm:$0xff] %v1485
        %s1490 = scalar_lea.vmem [#allocation1], 16
        %1491 = vst [vmem:[%s1490] ss:$2 sm:$0xff] %v1486
        %v1492 = vld.sshfl [vmem:[#allocation1] sm:$0xff pattern:$0x75316420]
        %v1493 = vld.sshfl [vmem:[#allocation1 + $0x8] sm:$0xff pattern:$0x75316420]
        %v1494 = vld.sshfl [vmem:[#allocation1 + $0x10] sm:$0xff pattern:$0x75316420]
        %1495 = vrot.lane.b32.xlu0 %v1492, 112
        %v1496 = vpop.permute.xlu0 %1495
        %1497 = vrot.lane.b32.xlu0 %v1493, 112
        %v1498 = vpop.permute.xlu0 %1497
        %1499 = vrot.lane.b32.xlu0 %v1494, 112
        %v1500 = vpop.permute.xlu0 %1499
        %v1501 = vsel %vm337, %v1496, %v1498
        %v1502 = vsel %vm337, %v1498, %v1500
        %1505 = vst [vmem:[#allocation2 + $0x110] sm:$0xf] %v1501
        %1506 = vst [vmem:[#allocation2 + $0x118] sm:$0xf] %v1502
        %v1507 = vld [vmem:[#allocation3 + $0x4] sm:$0xff]
        %v1508 = vld [vmem:[#allocation3 + $0xc] sm:$0xf]
        %s1509 = scalar_lea.vmem [#allocation7], 67
        %v1510 = vld [vmem:[%s1509] ss:$8 sm:$0x3]
        %v1512 = vperm.slane %v1510, 0
        %v1513 = vperm.slane %v1510, 1
        %v1514 = vrot.slane %v1513, 4
        %v1515 = vsel %vm293, %v1512, %v1514
        %1516 = vrot.lane.b32.xlu0 %v1515, 25
        %v1517 = vpop.permute.xlu0 %1516
        %v1518 = vrot.slane %v1517, 4
        %v1519 = vsel %vm1264, %v1518, %v1517
        %v1522 = vmul.f32 %v1507, %v1519
        %v1523 = vmul.f32 %v1508, %v1518
        %s1526 = scalar_lea.vmem [#allocation1], 1
        %1527 = vst [vmem:[%s1526] ss:$2 sm:$0xff] %v1522
        %s1528 = scalar_lea.vmem [#allocation1], 17
        %1529 = vst [vmem:[%s1528] ss:$2 sm:$0xff] %v1523
        %v1530 = vld.sshfl [vmem:[#allocation1] sm:$0xff pattern:$0x75316420]
        %v1531 = vld.sshfl [vmem:[#allocation1 + $0x8] sm:$0xff pattern:$0x75316420]
        %v1532 = vld.sshfl [vmem:[#allocation1 + $0x10] sm:$0xff pattern:$0x75316420]
        %1533 = vrot.lane.b32.xlu0 %v1530, 103
        %v1534 = vpop.permute.xlu0 %1533
        %1535 = vrot.lane.b32.xlu0 %v1531, 103
        %v1536 = vpop.permute.xlu0 %1535
        %1537 = vrot.lane.b32.xlu0 %v1532, 103
        %v1538 = vpop.permute.xlu0 %1537
        %v1539 = vsel %vm1243, %v1534, %v1536
        %v1540 = vsel %vm1243, %v1536, %v1538
        %1543 = vst [vmem:[#allocation2 + $0x110] sm:$0xf0] %v1539
        %1544 = vst [vmem:[#allocation2 + $0x118] sm:$0xf0] %v1540
        %1545 = vst [vmem:[#allocation1] ss:$2 sm:$0xff] %v283
        %v1546 = vld.sshfl [vmem:[#allocation1] sm:$0xff pattern:$0x75316420]
        %v1547 = vld.sshfl [vmem:[#allocation1 + $0x8] sm:$0xff pattern:$0x75316420]
        %v1548 = vrot.slane %v1546, 7
        %v1549 = vrot.slane %v1547, 7
        %1552 = vst [vmem:[#allocation2 + $0x120] sm:$0x1e] %v1548
        %1553 = vst [vmem:[#allocation2 + $0x128] sm:$0x1e] %v1549
        %v1554 = vld [vmem:[#allocation9] sm:$0xff]
        %v1555 = vld [vmem:[#allocation9 + $0x8] sm:$0xff]
        %v1556 = vld [vmem:[#allocation9 + $0x10] sm:$0xff]
        %v1557 = vld [vmem:[#allocation9 + $0x18] sm:$0xff]
        %v1558 = vld [vmem:[#allocation2] sm:$0xff]
        %v1559 = vld [vmem:[#allocation2 + $0x8] sm:$0xff]
        %v1560 = vld [vmem:[#allocation2 + $0x10] sm:$0xff]
        %v1561 = vld [vmem:[#allocation2 + $0x18] sm:$0xff]
        %v1562 = vld [vmem:[#allocation2 + $0x20] sm:$0xff]
        %v1563 = vld [vmem:[#allocation2 + $0x28] sm:$0xff]
        %v1564 = vld [vmem:[#allocation2 + $0x30] sm:$0xff]
        %v1565 = vld [vmem:[#allocation2 + $0x38] sm:$0xff]
        %v1566 = vld [vmem:[#allocation2 + $0x40] sm:$0xff]
        %v1567 = vld [vmem:[#allocation2 + $0x48] sm:$0xff]
        %v1568 = vld [vmem:[#allocation2 + $0x50] sm:$0xff]
        %v1569 = vld [vmem:[#allocation2 + $0x58] sm:$0xff]
        %v1570 = vld [vmem:[#allocation2 + $0x60] sm:$0xff]
        %v1571 = vld [vmem:[#allocation2 + $0x68] sm:$0xff]
        %v1572 = vld [vmem:[#allocation2 + $0x70] sm:$0xff]
        %v1573 = vld [vmem:[#allocation2 + $0x78] sm:$0xff]
        %v1574 = vld [vmem:[#allocation2 + $0x80] sm:$0xff]
        %v1575 = vld [vmem:[#allocation2 + $0x88] sm:$0xff]
        %v1576 = vld [vmem:[#allocation2 + $0x90] sm:$0xff]
        %v1577 = vld [vmem:[#allocation2 + $0x98] sm:$0xff]
        %v1578 = vld [vmem:[#allocation2 + $0xa0] sm:$0xff]
        %v1579 = vld [vmem:[#allocation2 + $0xa8] sm:$0xff]
        %v1580 = vld [vmem:[#allocation2 + $0xb0] sm:$0xff]
        %v1581 = vld [vmem:[#allocation2 + $0xb8] sm:$0xff]
        %v1582 = vld [vmem:[#allocation2 + $0xc0] sm:$0xff]
        %v1583 = vld [vmem:[#allocation2 + $0xc8] sm:$0xff]
        %v1584 = vld [vmem:[#allocation2 + $0xd0] sm:$0xff]
        %v1585 = vld [vmem:[#allocation2 + $0xd8] sm:$0xff]
        %v1586 = vld [vmem:[#allocation2 + $0xe0] sm:$0xff]
        %v1587 = vld [vmem:[#allocation2 + $0xe8] sm:$0xff]
        %v1588 = vld [vmem:[#allocation2 + $0xf0] sm:$0xff]
        %v1589 = vld [vmem:[#allocation2 + $0xf8] sm:$0xff]
        %v1590 = vld [vmem:[#allocation2 + $0x100] sm:$0xff]
        %v1591 = vld [vmem:[#allocation2 + $0x108] sm:$0xff]
        %v1592 = vld [vmem:[#allocation2 + $0x110] sm:$0xff]
        %v1593 = vld [vmem:[#allocation2 + $0x118] sm:$0xff]
        %v1594 = vld [vmem:[#allocation2 + $0x120] sm:$0x1f]
        %v1595 = vld [vmem:[#allocation2 + $0x128] sm:$0x1f]
        %vm1596 = vcmask 171008
        %v1598 = vsel %vm1596, %v1555, 0
        %v1601 = vsel %vm1596, %v1557, 0
        %vm1603 = vcmask 1044480
        %v1605 = vsel %vm1603, %v1594, 0
        %v1608 = vsel %vm1603, %v1595, 0
        %1610 = vmatpush.msra.mxu0 %v1588
        %1611 = vmatpush.msra.mxu0 %v1586
        %1612 = vmatpush.msra.mxu0 %v1584
        %1613 = vmatpush.msra.mxu0 %v1582
        %1614 = vmatpush.msra.mxu0 %v1580
        %1615 = vmatpush.msra.mxu0 %v1578
        %1616 = vmatpush.msra.mxu0 %v1576
        %1617 = vmatpush.msra.mxu0 %v1574
        %1618 = vmatpush.msra.mxu0 %v1572
        %1619 = vmatpush.msra.mxu0 %v1570
        %1620 = vmatpush.msra.mxu0 %v1568
        %1621 = vmatpush.msra.mxu0 %v1566
        %1622 = vmatpush.msra.mxu0 %v1564
        %1623 = vmatpush.msra.mxu0 %v1562
        %1624 = vmatpush.msra.mxu0 %v1560
        %1625 = vmatpush.msra.mxu0 %v1558
        %1626 = vmatmul.f32.gmra.mxu0 %v1554
        %v1627 = vpop.f32.mrf.mxu0
        %v1628 = vadd.f32 0.0, %v1627
        %1629 = vmatmul.f32.gmra.mxu0 %v1556
        %v1630 = vpop.f32.mrf.mxu0
        %v1631 = vadd.f32 0.0, %v1630
        %1632 = vdwg.mxu0
        %1633 = vmatpush.msra.mxu0 0.0
        %1634 = vmatpush.msra.mxu0 0.0
        %1635 = vmatpush.msra.mxu0 0.0
        %1636 = vmatpush.msra.mxu0 0.0
        %1637 = vmatpush.msra.mxu0 0.0
        %1638 = vmatpush.msra.mxu0 0.0
        %1639 = vmatpush.msra.mxu0 0.0
        %1640 = vmatpush.msra.mxu0 0.0
        %1641 = vmatpush.msra.mxu0 0.0
        %1642 = vmatpush.msra.mxu0 0.0
        %1643 = vmatpush.msra.mxu0 0.0
        %1644 = vmatpush.msra.mxu0 0.0
        %1645 = vmatpush.msra.mxu0 0.0
        %1646 = vmatpush.msra.mxu0 %v1605
        %1647 = vmatpush.msra.mxu0 %v1592
        %1648 = vmatpush.msra.mxu0 %v1590
        %1649 = vmatmul.f32.gmra.mxu0 %v1598
        %v1650 = vpop.f32.mrf.mxu0
        %v1651 = vadd.f32 %v1628, %v1650
        %1652 = vmatmul.f32.gmra.mxu0 %v1601
        %v1653 = vpop.f32.mrf.mxu0
        %v1654 = vadd.f32 %v1631, %v1653
        %1655 = vdwg.mxu0
        %1656 = vmatpush.msra.mxu0 %v1589
        %1657 = vmatpush.msra.mxu0 %v1587
        %1658 = vmatpush.msra.mxu0 %v1585
        %1659 = vmatpush.msra.mxu0 %v1583
        %1660 = vmatpush.msra.mxu0 %v1581
        %1661 = vmatpush.msra.mxu0 %v1579
        %1662 = vmatpush.msra.mxu0 %v1577
        %1663 = vmatpush.msra.mxu0 %v1575
        %1664 = vmatpush.msra.mxu0 %v1573
        %1665 = vmatpush.msra.mxu0 %v1571
        %1666 = vmatpush.msra.mxu0 %v1569
        %1667 = vmatpush.msra.mxu0 %v1567
        %1668 = vmatpush.msra.mxu0 %v1565
        %1669 = vmatpush.msra.mxu0 %v1563
        %1670 = vmatpush.msra.mxu0 %v1561
        %1671 = vmatpush.msra.mxu0 %v1559
        %1672 = vmatmul.f32.gmra.mxu0 %v1554
        %v1673 = vpop.f32.mrf.mxu0
        %v1674 = vadd.f32 0.0, %v1673
        %1675 = vmatmul.f32.gmra.mxu0 %v1556
        %v1676 = vpop.f32.mrf.mxu0
        %v1677 = vadd.f32 0.0, %v1676
        %1678 = vdwg.mxu0
        %1679 = vmatpush.msra.mxu0 0.0
        %1680 = vmatpush.msra.mxu0 0.0
        %1681 = vmatpush.msra.mxu0 0.0
        %1682 = vmatpush.msra.mxu0 0.0
        %1683 = vmatpush.msra.mxu0 0.0
        %1684 = vmatpush.msra.mxu0 0.0
        %1685 = vmatpush.msra.mxu0 0.0
        %1686 = vmatpush.msra.mxu0 0.0
        %1687 = vmatpush.msra.mxu0 0.0
        %1688 = vmatpush.msra.mxu0 0.0
        %1689 = vmatpush.msra.mxu0 0.0
        %1690 = vmatpush.msra.mxu0 0.0
        %1691 = vmatpush.msra.mxu0 0.0
        %1692 = vmatpush.msra.mxu0 %v1608
        %1693 = vmatpush.msra.mxu0 %v1593
        %1694 = vmatpush.msra.mxu0 %v1591
        %1695 = vmatmul.f32.gmra.mxu0 %v1598
        %v1696 = vpop.f32.mrf.mxu0
        %v1697 = vadd.f32 %v1674, %v1696
        %1698 = vmatmul.f32.gmra.mxu0 %v1601
        %v1699 = vpop.f32.mrf.mxu0
        %v1700 = vadd.f32 %v1677, %v1699
        %1701 = vdwg.mxu0
        %v1702 = vmax.f32 %v1651, 0.0
        %v1703 = vmax.f32 %v1697, 0.0
        %v1704 = vld [vmem:[%s3] sm:$0xff]
        %v1705 = vld [vmem:[%s4] sm:$0xff]
        %1707 = vset.pattern.permute.xlu0 0
        %1708 = vperm.xlu0 %1707, %v1705
        %v1709 = vpop.permute.xlu0 %1708
        %vm1711 = vcmask 64512
        %v1713 = vsel %vm1711, %v1704, 0
        %1715 = vmatpush.msra.mxu0 0.0
        %1716 = vmatpush.msra.mxu0 0.0
        %1717 = vmatpush.msra.mxu0 0.0
        %1718 = vmatpush.msra.mxu0 0.0
        %1719 = vmatpush.msra.mxu0 0.0
        %1720 = vmatpush.msra.mxu0 0.0
        %1721 = vmatpush.msra.mxu0 0.0
        %1722 = vmatpush.msra.mxu0 0.0
        %1723 = vmatpush.msra.mxu0 0.0
        %1724 = vmatpush.msra.mxu0 0.0
        %1725 = vmatpush.msra.mxu0 0.0
        %1726 = vmatpush.msra.mxu0 0.0
        %1727 = vmatpush.msra.mxu0 0.0
        %1728 = vmatpush.msra.mxu0 0.0
        %1729 = vmatpush.msra.mxu0 0.0
        %1730 = vmatpush.msra.mxu0 %v1702
        %1731 = vmatmul.f32.gmra.mxu0 %v1713
        %v1732 = vpop.f32.mrf.mxu0
        %v1733 = vadd.f32 %v1709, %v1732
        %1734 = vdwg.mxu0
        %1735 = vmatpush.msra.mxu0 0.0
        %1736 = vmatpush.msra.mxu0 0.0
        %1737 = vmatpush.msra.mxu0 0.0
        %1738 = vmatpush.msra.mxu0 0.0
        %1739 = vmatpush.msra.mxu0 0.0
        %1740 = vmatpush.msra.mxu0 0.0
        %1741 = vmatpush.msra.mxu0 0.0
        %1742 = vmatpush.msra.mxu0 0.0
        %1743 = vmatpush.msra.mxu0 0.0
        %1744 = vmatpush.msra.mxu0 0.0
        %1745 = vmatpush.msra.mxu0 0.0
        %1746 = vmatpush.msra.mxu0 0.0
        %1747 = vmatpush.msra.mxu0 0.0
        %1748 = vmatpush.msra.mxu0 0.0
        %1749 = vmatpush.msra.mxu0 0.0
        %1750 = vmatpush.msra.mxu0 %v1703
        %1751 = vmatmul.f32.gmra.mxu0 %v1713
        %v1752 = vpop.f32.mrf.mxu0
        %v1753 = vadd.f32 %v1709, %v1752
        %1754 = vdwg.mxu0
        %v1755 = vmax.f32 %v1733, 0.0
        %v1756 = vmax.f32 %v1753, 0.0
        %v1757 = vadd.f32 %v1755, %v1654
        %v1758 = vadd.f32 %v1756, %v1700
        %1759 = vst [vmem:[%s275] sm:$0xff] %v1757
        %1760 = vst [vmem:[%s275 + $0x8] sm:$0xff] %v1758
        %s1761 = sand.u32 %s141, 1
        %s1762 = scalar_lea.sflag [#allocation6], %s1761
        %s1763 = sand.u32 %s141, 1
        %s1764 = smul.addr %s1763, 16
        %s1765 = scalar_lea.vmem [#allocation10], %s1764
        // Predicated region
        $region53: #{tpu_custom_call.1} parent=39 // pred_check
          %p1766 = pneg %p151
        $region54: #{tpu_custom_call.1} parent=39 // pred_check_branch
          %1768 = sbr.rel (%p1766) target = $region56
        $region55: #{tpu_custom_call.1} parent=39 // pred_region
          %1770 = vsyncadd %s1762, 0
          %s1771 = smul.addr %s23, 2
          %s1772 = smul.addr %s1771, 8
          %s1773 = scalar_lea.hbm %s5, %s1772
          %s1775 = sshll.u32 %s1765, 4
          %s1776 = int_to_ptr.vmem [resolvable:$true] %s1775
          %s1777 = sshll.u32 %s1773, 4
          %s1778 = int_to_ptr.hbm [resolvable:$true] %s1777
          %1780 = dma.vmem_to_hbm [thread:$0]  %s1776, 256, %s1778, %s1762
        $region56: #{tpu_custom_call.1} parent=39 // pred_fallthru
          _
      $region40: #{tpu_custom_call.1} parent=5 // pred_fallthru
        _
      %p1781 = scmp.le.s32.totalorder 2, %s18
      // Predicated region
      $region57: #{tpu_custom_call.1} parent=5 // pred_check
        %p1782 = pneg %p1781
      $region58: #{tpu_custom_call.1} parent=5 // pred_check_branch
        %1784 = sbr.rel (%p1782) target = $region60
      $region59: #{tpu_custom_call.1} parent=5 // pred_region
        %s1785 = ssub.s32 %s18, 2
        // Predicated region
        $region61: #{tpu_custom_call.1} parent=59 // pred_check
          %p1786 = pneg %p157
        $region62: #{tpu_custom_call.1} parent=59 // pred_check_branch
          %1788 = sbr.rel (%p1786) target = $region64
        $region63: #{tpu_custom_call.1} parent=59 // pred_region
          %s1789 = sand.u32 %s142, 1
          %s1790 = scalar_lea.sflag [#allocation6], %s1789
          %s1791 = sand.u32 %s142, 1
          %s1792 = smul.addr %s1791, 16
          %s1793 = scalar_lea.vmem [#allocation10], %s1792
          %1795 = dma.done %s1790, 256
        $region64: #{tpu_custom_call.1} parent=59 // pred_fallthru
          _
      $region60: #{tpu_custom_call.1} parent=5 // pred_fallthru
        _
    $region6: #{tpu_custom_call.1} parent=1 // loop_footer
      %s22 = sadd.s32 1, %s18
    $region7: #{tpu_custom_call.1} parent=1 // loop_footer_branch
      %17 = sbr.rel target = $region3
    $region8: #{tpu_custom_call.1} parent=1 // loop_exit
      _
    %1796 = vsyncpa [#allocation5], 1
    %s1797 = scalar_lea.sflag [#allocation5], 1
    %1798 = vsyncpa %s1797, 1
    %1799 = vsyncpa [#allocation8], 1
    %1800 = vsyncpa [#allocation6], 1
    %s1801 = scalar_lea.sflag [#allocation6], 1
    %1802 = vsyncpa %s1801, 1

</llo_original>
